<compile_context>
chip_gen: v7x
topology: tpu7x:2x2x1
jax: 0.10.0
libtpu: 0.0.40
codegen_flags: <defaults>
</compile_context>

<pallas_src>
import functools

import jax
import jax.numpy as jnp
from jax import lax
from jax.experimental import pallas as pl
from jax.experimental.pallas import tpu as pltpu


def _self_attn_kernel(scalars_ref,          # SMEM (2,): [gamma, bq.bk]
                      m_ref,                # (C, C)  = Wq^T Wk
                      u_ref,                # (1, C)  = bq^T Wk
                      w_ref,                # (C, 1)  = Wq^T bk
                      wv_ref, bv_ref,       # (C, C), (C, 1)
                      x_ref,                # (1, C, N)   full spatial block
                      out_ref,              # (1, C, TQ)
                      attn_ref,             # (1, TQ, N)
                      mx_scr,               # VMEM (C, N) f32 : M @ x + Wq^T bk
                      colb_scr,             # VMEM (1, N) f32 : bq^T Wk x + bq.bk
                      v_scr,                # VMEM (C, N) bf16: Wv x + bv
                      *, tq):
    qi = pl.program_id(1)

    # ---- per-batch work: done once at the first query tile, kept in scratch ----
    @pl.when(qi == 0)
    def _():
        x_full = x_ref[0]                                                 # (C, N)
        # key-side linear map (+ folded query-bias row term)
        mx_scr[...] = (jnp.dot(m_ref[...], x_full,
                               preferred_element_type=jnp.float32)
                       + w_ref[...])                                      # (C, N)
        # key-bias column term + constant bias
        colb_scr[...] = (jnp.dot(u_ref[...], x_full,
                                 preferred_element_type=jnp.float32)
                         + scalars_ref[1])                                # (1, N)
        # value projection (stored bf16 for the dominant P.V matmul)
        v = (jnp.dot(wv_ref[...], x_full,
                     preferred_element_type=jnp.float32) + bv_ref[...])   # (C, N)
        v_scr[...] = v.astype(jnp.bfloat16)

    # ---- this query tile ----
    q_start = pl.multiple_of(qi * tq, tq)
    x_q = x_ref[0, :, pl.ds(q_start, tq)]                                 # (C, TQ)

    # energy[i, j] = x_i^T M x_j + (Wq^T bk).x_i + bq^T Wk x_j + bq.bk
    # (contraction over C on axis 0 of both operands -> no transpose)
    energy = lax.dot_general(x_q, mx_scr[...],
                             (((0,), (0,)), ((), ())),
                             preferred_element_type=jnp.float32)          # (TQ, N)
    energy = energy + colb_scr[...]

    # row softmax
    m = jnp.max(energy, axis=-1, keepdims=True)
    e = jnp.exp(energy - m)
    attn = e * pl.reciprocal(jnp.sum(e, axis=-1, keepdims=True), approx=True)
    attn_ref[0] = attn

    # out[c, i] = sum_j v[c, j] * attn[i, j]   (bf16 operands, f32 accumulate)
    out_v = lax.dot_general(v_scr[...], attn.astype(jnp.bfloat16),
                            (((1,), (1,)), ((), ())),
                            preferred_element_type=jnp.float32)           # (C, TQ)

    out_ref[0] = scalars_ref[0] * out_v + x_q


def self_attn_forward(x_nchw, params, tq=128):
    """x_nchw: (B, C, W, H) float32. params: dict of weights.

    Returns (out (B,C,W,H), attention (B,N,N)) matching the PyTorch module.
    """
    B, C, W, H = x_nchw.shape
    N = W * H
    x = x_nchw.reshape(B, C, N).astype(jnp.float32)

    wq, bq = params["wq"], params["bq"]
    wk, bk = params["wk"], params["bk"]
    wv, bv = params["wv"], params["bv"]

    # Fuse the query/key 1x1 convs (contraction over C instead of C//8).
    m_qk = wq.T @ wk                              # (C, C)
    u_row = bq.T @ wk                             # (1, C)
    w_col = wq.T @ bk                             # (C, 1)
    c_qk = jnp.sum(bq * bk)                       # scalar
    scalars = jnp.stack(
        [params["gamma"].reshape(()), c_qk]).astype(jnp.float32)   # (2,) -> SMEM

    # Query-tile size: lane-dense multiple of 128 when possible.
    # TODO(synk): pad N to a multiple of 128 (with key masking) instead of
    # falling back to a single full-N query tile for odd spatial sizes.
    if N % tq != 0 or tq % 128 != 0:
        tq = N
    n_q = N // tq

    # Rough working-set estimate; raise scoped VMEM only if the default 32 MiB
    # would be exceeded (capped well under v7x's 64 MiB physical VMEM).
    est_bytes = (2 * (C * N + C * tq + tq * N) * 4      # double-buffered blocks
                 + C * N * 4 + C * N * 2 + N * 4        # scratch (mx, v, colb)
                 + 4 * C * C * 4)                       # weights
    vmem_limit = None
    if est_bytes > 32 * 1024 * 1024:
        vmem_limit = min(int(est_bytes * 5 // 4), 56 * 1024 * 1024)

    kernel = functools.partial(_self_attn_kernel, tq=tq)

    out, attn = pl.pallas_call(
        kernel,
        out_shape=(
            jax.ShapeDtypeStruct((B, C, N), jnp.float32),
            jax.ShapeDtypeStruct((B, N, N), jnp.float32),
        ),
        grid_spec=pltpu.PrefetchScalarGridSpec(
            num_scalar_prefetch=0,
            grid=(B, n_q),
            in_specs=[
                pl.BlockSpec(memory_space=pltpu.MemorySpace.SMEM),       # scalars
                pl.BlockSpec((C, C), lambda b, q: (0, 0)),               # M = Wq^T Wk
                pl.BlockSpec((1, C), lambda b, q: (0, 0)),               # bq^T Wk
                pl.BlockSpec((C, 1), lambda b, q: (0, 0)),               # Wq^T bk
                pl.BlockSpec((C, C), lambda b, q: (0, 0)),               # Wv
                pl.BlockSpec((C, 1), lambda b, q: (0, 0)),               # bv
                pl.BlockSpec((1, C, N), lambda b, q: (b, 0, 0)),         # x (full N)
            ],
            out_specs=[
                pl.BlockSpec((1, C, tq), lambda b, q: (b, 0, q)),        # out tile
                pl.BlockSpec((1, tq, N), lambda b, q: (b, q, 0)),        # attn tile
            ],
            scratch_shapes=[
                pltpu.VMEM((C, N), jnp.float32),      # M @ x + Wq^T bk
                pltpu.VMEM((1, N), jnp.float32),      # bq^T Wk x + bq.bk
                pltpu.VMEM((C, N), jnp.bfloat16),     # value projection
            ],
        ),
        compiler_params=pltpu.CompilerParams(
            dimension_semantics=("parallel", "arbitrary"),
            vmem_limit_bytes=vmem_limit),
    )(scalars, m_qk, u_row, w_col, wv, bv, x)

    return out.reshape(B, C, W, H), attn


def init_params(key, in_dim):
    """Deterministic init matching nn.Conv2d(in_dim, out, 1) parameter shapes."""
    c8 = in_dim // 8
    ks = jax.random.split(key, 6)
    scale = 1.0 / jnp.sqrt(in_dim)
    return {
        # 1x1 conv weights (out, in, 1, 1) collapsed to (out, in)
        "wq": jax.random.uniform(ks[0], (c8, in_dim), jnp.float32, -scale, scale),
        "bq": jax.random.uniform(ks[1], (c8, 1), jnp.float32, -scale, scale),
        "wk": jax.random.uniform(ks[2], (c8, in_dim), jnp.float32, -scale, scale),
        "bk": jax.random.uniform(ks[3], (c8, 1), jnp.float32, -scale, scale),
        "wv": jax.random.uniform(ks[4], (in_dim, in_dim), jnp.float32, -scale, scale),
        "bv": jax.random.uniform(ks[5], (in_dim, 1), jnp.float32, -scale, scale),
        # The PyTorch module initializes gamma to zero; use a nonzero value
        # here ONLY so the attention branch is exercised numerically in tests.
        "gamma": jnp.array([0.5], dtype=jnp.float32),
    }


def _reference(x, p):
    """Pure-JAX reference mirroring the PyTorch forward (unfused q/k path)."""
    B, C, W, H = x.shape
    N = W * H
    xf = x.reshape(B, C, N)
    q = jnp.einsum("oc,bcn->bon", p["wq"], xf) + p["bq"][None]        # (B, C8, N)
    k = jnp.einsum("oc,bcn->bon", p["wk"], xf) + p["bk"][None]
    v = jnp.einsum("oc,bcn->bon", p["wv"], xf) + p["bv"][None]
    energy = jnp.einsum("bci,bcj->bij", q, k)                          # (B, N, N)
    attn = jax.nn.softmax(energy, axis=-1)
    out = jnp.einsum("bcj,bij->bci", v, attn)                          # (B, C, N)
    out = p["gamma"][0] * out + xf
    return out.reshape(B, C, W, H), attn


if __name__ == "__main__":
    key = jax.random.PRNGKey(0)
    k_x, k_p = jax.random.split(key)

    B, C, W, H = 2, 16, 16, 16        # in_dim=16 -> inner dim 2, N = 256
    x = jax.random.normal(k_x, (B, C, W, H), dtype=jnp.float32)
    params = init_params(k_p, C)

    out, attn = self_attn_forward(x, params)
    out = jax.block_until_ready(out)
    attn = jax.block_until_ready(attn)

    ref_out, ref_attn = _reference(x, params)
    assert out.shape == (B, C, W, H) and attn.shape == (B, W * H, W * H)
    # Tolerances account for the fused-QK algebra, approx reciprocal, and the
    # bf16 P.V matmul (f32 accumulation).
    assert jnp.allclose(attn, ref_attn, atol=1e-3, rtol=1e-2), \
        float(jnp.max(jnp.abs(attn - ref_attn)))
    assert jnp.allclose(out, ref_out, atol=3e-2, rtol=3e-2), \
        float(jnp.max(jnp.abs(out - ref_out)))

    print("KERNEL_OK")
</pallas_src>

<mosaic_0001>
module attributes {stable_mosaic.version = 11 : i64} {
  func.func @_self_attn_kernel(%arg0: i32, %arg1: i32, %arg2: memref<2xf32, #tpu.memory_space<smem>>, %arg3: memref<16x16xf32, #tpu.memory_space<vmem>>, %arg4: memref<1x16xf32, #tpu.memory_space<vmem>>, %arg5: memref<16x1xf32, #tpu.memory_space<vmem>>, %arg6: memref<16x16xf32, #tpu.memory_space<vmem>>, %arg7: memref<16x1xf32, #tpu.memory_space<vmem>>, %arg8: memref<1x16x256xf32, #tpu.memory_space<vmem>>, %arg9: memref<1x16x128xf32, #tpu.memory_space<vmem>>, %arg10: memref<1x128x256xf32, #tpu.memory_space<vmem>>, %arg11: memref<16x256xf32, #tpu.memory_space<vmem>>, %arg12: memref<1x256xf32, #tpu.memory_space<vmem>>, %arg13: memref<16x256xbf16, #tpu.memory_space<vmem>>) attributes {dimension_semantics = [#tpu.dimension_semantics<parallel>, #tpu.dimension_semantics<arbitrary>], iteration_bounds = array<i64: 2, 2>, scalar_prefetch = 0 : i64, scratch_operands = 3 : i64, tpu.core_type = #tpu.core_type<tc>, window_params = [{transform_indices = @transform_0, window_bounds = array<i64: 2>}, {pipeline_mode = #tpu.pipeline_mode<synchronous>, transform_indices = @transform_1, window_bounds = array<i64: 16, 16>}, {pipeline_mode = #tpu.pipeline_mode<synchronous>, transform_indices = @transform_2, window_bounds = array<i64: 1, 16>}, {pipeline_mode = #tpu.pipeline_mode<synchronous>, transform_indices = @transform_3, window_bounds = array<i64: 16, 1>}, {pipeline_mode = #tpu.pipeline_mode<synchronous>, transform_indices = @transform_4, window_bounds = array<i64: 16, 16>}, {pipeline_mode = #tpu.pipeline_mode<synchronous>, transform_indices = @transform_5, window_bounds = array<i64: 16, 1>}, {transform_indices = @transform_6, window_bounds = array<i64: 1, 16, 256>}, {transform_indices = @transform_7, window_bounds = array<i64: 1, 16, 128>}, {transform_indices = @transform_8, window_bounds = array<i64: 1, 128, 256>}]} {
    %c0_i32 = arith.constant 0 : i32
    %0 = arith.cmpi eq, %arg1, %c0_i32 : i32
    %1 = arith.extui %0 : i1 to i32
    %c0_i32_0 = arith.constant 0 : i32
    %2 = arith.cmpi ne, %1, %c0_i32_0 : i32
    scf.if %2 {
      %c0_18 = arith.constant 0 : index
      %c0_19 = arith.constant 0 : index
      %c0_20 = arith.constant 0 : index
      %36 = vector.load %arg8[%c0_18, %c0_19, %c0_20] : memref<1x16x256xf32, #tpu.memory_space<vmem>>, vector<1x16x256xf32>
      %37 = vector.shape_cast %36 : vector<1x16x256xf32> to vector<16x256xf32>
      %c0_21 = arith.constant 0 : index
      %c0_22 = arith.constant 0 : index
      %38 = vector.load %arg3[%c0_21, %c0_22] : memref<16x16xf32, #tpu.memory_space<vmem>>, vector<16x16xf32>
      %cst_23 = arith.constant dense<0.000000e+00> : vector<16x256xf32>
      %39 = tpu.matmul %38, %37, %cst_23 {dimension_numbers = #tpu.dot_dimension_numbers<[1], [0], [0], [1], [0, 0, 1, 1], [], []>} : vector<16x16xf32>, vector<16x256xf32>, vector<16x256xf32> -> vector<16x256xf32>
      %c0_24 = arith.constant 0 : index
      %c0_25 = arith.constant 0 : index
      %40 = vector.load %arg5[%c0_24, %c0_25] : memref<16x1xf32, #tpu.memory_space<vmem>>, vector<16x1xf32>
      %41 = vector.broadcast %40 : vector<16x1xf32> to vector<16x256xf32>
      %42 = arith.addf %39, %41 : vector<16x256xf32>
      %c0_26 = arith.constant 0 : index
      %c0_27 = arith.constant 0 : index
      %43 = vector.load %arg11[%c0_26, %c0_27] : memref<16x256xf32, #tpu.memory_space<vmem>>, vector<16x256xf32>
      tpu.vector_store %arg11[%c0_26, %c0_27], %42 {strides = array<i32>} : memref<16x256xf32, #tpu.memory_space<vmem>>, vector<16x256xf32>,
      %c0_28 = arith.constant 0 : index
      %c0_29 = arith.constant 0 : index
      %44 = vector.load %arg4[%c0_28, %c0_29] : memref<1x16xf32, #tpu.memory_space<vmem>>, vector<1x16xf32>
      %cst_30 = arith.constant dense<0.000000e+00> : vector<1x256xf32>
      %45 = tpu.matmul %44, %37, %cst_30 {dimension_numbers = #tpu.dot_dimension_numbers<[1], [0], [0], [1], [0, 0, 1, 1], [], []>} : vector<1x16xf32>, vector<16x256xf32>, vector<1x256xf32> -> vector<1x256xf32>
      %c1 = arith.constant 1 : index
      %46 = memref.load %arg2[%c1] : memref<2xf32, #tpu.memory_space<smem>>
      %47 = vector.broadcast %46 : f32 to vector<1x256xf32>
      %48 = arith.addf %45, %47 : vector<1x256xf32>
      %c0_31 = arith.constant 0 : index
      %c0_32 = arith.constant 0 : index
      %49 = vector.load %arg12[%c0_31, %c0_32] : memref<1x256xf32, #tpu.memory_space<vmem>>, vector<1x256xf32>
      tpu.vector_store %arg12[%c0_31, %c0_32], %48 {strides = array<i32>} : memref<1x256xf32, #tpu.memory_space<vmem>>, vector<1x256xf32>,
      %c0_33 = arith.constant 0 : index
      %c0_34 = arith.constant 0 : index
      %50 = vector.load %arg6[%c0_33, %c0_34] : memref<16x16xf32, #tpu.memory_space<vmem>>, vector<16x16xf32>
      %cst_35 = arith.constant dense<0.000000e+00> : vector<16x256xf32>
      %51 = tpu.matmul %50, %37, %cst_35 {dimension_numbers = #tpu.dot_dimension_numbers<[1], [0], [0], [1], [0, 0, 1, 1], [], []>} : vector<16x16xf32>, vector<16x256xf32>, vector<16x256xf32> -> vector<16x256xf32>
      %c0_36 = arith.constant 0 : index
      %c0_37 = arith.constant 0 : index
      %52 = vector.load %arg7[%c0_36, %c0_37] : memref<16x1xf32, #tpu.memory_space<vmem>>, vector<16x1xf32>
      %53 = vector.broadcast %52 : vector<16x1xf32> to vector<16x256xf32>
      %54 = arith.addf %51, %53 : vector<16x256xf32>
      %55 = arith.truncf %54 : vector<16x256xf32> to vector<16x256xbf16>
      %c0_38 = arith.constant 0 : index
      %c0_39 = arith.constant 0 : index
      %56 = vector.load %arg13[%c0_38, %c0_39] : memref<16x256xbf16, #tpu.memory_space<vmem>>, vector<16x256xbf16>
      tpu.vector_store %arg13[%c0_38, %c0_39], %55 {strides = array<i32>} : memref<16x256xbf16, #tpu.memory_space<vmem>>, vector<16x256xbf16>,
    } else {
    }
    %c128_i32 = arith.constant 128 : i32
    %3 = arith.muli %arg1, %c128_i32 : i32
    %4 = tpu.assume_multiple %3, 128 : i32
    %c0 = arith.constant 0 : index
    %c0_1 = arith.constant 0 : index
    %5 = arith.index_cast %4 : i32 to index
    %6 = vector.load %arg8[%c0, %c0_1, %5] : memref<1x16x256xf32, #tpu.memory_space<vmem>>, vector<1x16x128xf32>
    %7 = vector.shape_cast %6 : vector<1x16x128xf32> to vector<16x128xf32>
    %c0_2 = arith.constant 0 : index
    %c0_3 = arith.constant 0 : index
    %8 = vector.load %arg11[%c0_2, %c0_3] : memref<16x256xf32, #tpu.memory_space<vmem>>, vector<16x256xf32>
    %cst = arith.constant dense<0.000000e+00> : vector<128x256xf32>
    %9 = tpu.matmul %7, %8, %cst {dimension_numbers = #tpu.dot_dimension_numbers<[0], [0], [1], [1], [0, 1, 1, 1], [], []>} : vector<16x128xf32>, vector<16x256xf32>, vector<128x256xf32> -> vector<128x256xf32>
    %c0_4 = arith.constant 0 : index
    %c0_5 = arith.constant 0 : index
    %10 = vector.load %arg12[%c0_4, %c0_5] : memref<1x256xf32, #tpu.memory_space<vmem>>, vector<1x256xf32>
    %11 = vector.broadcast %10 : vector<1x256xf32> to vector<128x256xf32>
    %12 = arith.addf %9, %11 : vector<128x256xf32>
    %cst_6 = arith.constant dense<0xFF800000> : vector<128xf32>
    %13 = vector.multi_reduction <maximumf>, %12, %cst_6 [1] : vector<128x256xf32> to vector<128xf32>
    %14 = vector.shape_cast %13 : vector<128xf32> to vector<128x1xf32>
    %15 = vector.broadcast %14 : vector<128x1xf32> to vector<128x256xf32>
    %16 = arith.subf %12, %15 : vector<128x256xf32>
    %17 = math.exp %16 : vector<128x256xf32>
    %cst_7 = arith.constant dense<0.000000e+00> : vector<128xf32>
    %18 = vector.multi_reduction <add>, %17, %cst_7 [1] : vector<128x256xf32> to vector<128xf32>
    %19 = vector.shape_cast %18 : vector<128xf32> to vector<128x1xf32>
    %20 = tpu.reciprocal %19 {approx = true} : vector<128x1xf32> -> vector<128x1xf32>
    %21 = vector.broadcast %20 : vector<128x1xf32> to vector<128x256xf32>
    %22 = arith.mulf %17, %21 : vector<128x256xf32>
    %c0_8 = arith.constant 0 : index
    %c0_9 = arith.constant 0 : index
    %c0_10 = arith.constant 0 : index
    %23 = vector.load %arg10[%c0_8, %c0_9, %c0_10] : memref<1x128x256xf32, #tpu.memory_space<vmem>>, vector<1x128x256xf32>
    %24 = vector.shape_cast %23 : vector<1x128x256xf32> to vector<128x256xf32>
    %25 = vector.shape_cast %22 : vector<128x256xf32> to vector<1x128x256xf32>
    tpu.vector_store %arg10[%c0_8, %c0_9, %c0_10], %25 {strides = array<i32>} : memref<1x128x256xf32, #tpu.memory_space<vmem>>, vector<1x128x256xf32>,
    %c0_11 = arith.constant 0 : index
    %c0_12 = arith.constant 0 : index
    %26 = vector.load %arg13[%c0_11, %c0_12] : memref<16x256xbf16, #tpu.memory_space<vmem>>, vector<16x256xbf16>
    %27 = arith.truncf %22 : vector<128x256xf32> to vector<128x256xbf16>
    %cst_13 = arith.constant dense<0.000000e+00> : vector<16x128xf32>
    %28 = tpu.matmul %26, %27, %cst_13 {dimension_numbers = #tpu.dot_dimension_numbers<[1], [1], [0], [0], [0, 0, 1, 0], [], []>} : vector<16x256xbf16>, vector<128x256xbf16>, vector<16x128xf32> -> vector<16x128xf32>
    %c0_14 = arith.constant 0 : index
    %29 = memref.load %arg2[%c0_14] : memref<2xf32, #tpu.memory_space<smem>>
    %30 = vector.broadcast %29 : f32 to vector<16x128xf32>
    %31 = arith.mulf %30, %28 : vector<16x128xf32>
    %32 = arith.addf %31, %7 : vector<16x128xf32>
    %c0_15 = arith.constant 0 : index
    %c0_16 = arith.constant 0 : index
    %c0_17 = arith.constant 0 : index
    %33 = vector.load %arg9[%c0_15, %c0_16, %c0_17] : memref<1x16x128xf32, #tpu.memory_space<vmem>>, vector<1x16x128xf32>
    %34 = vector.shape_cast %33 : vector<1x16x128xf32> to vector<16x128xf32>
    %35 = vector.shape_cast %32 : vector<16x128xf32> to vector<1x16x128xf32>
    tpu.vector_store %arg9[%c0_15, %c0_16, %c0_17], %35 {strides = array<i32>} : memref<1x16x128xf32, #tpu.memory_space<vmem>>, vector<1x16x128xf32>,
    return
  }
  func.func @transform_0(%arg0: i32, %arg1: i32) -> i32 {
    %c0_i32 = arith.constant 0 : i32
    %c0_i32_0 = arith.constant 0 : i32
    return %c0_i32 : i32
  }
  func.func @transform_1(%arg0: i32, %arg1: i32) -> (i32, i32) {
    %c0_i32 = arith.constant 0 : i32
    %c0_i32_0 = arith.constant 0 : i32
    %c0_i32_1 = arith.constant 0 : i32
    return %c0_i32, %c0_i32_0 : i32, i32
  }
  func.func @transform_2(%arg0: i32, %arg1: i32) -> (i32, i32) {
    %c0_i32 = arith.constant 0 : i32
    %c0_i32_0 = arith.constant 0 : i32
    %c0_i32_1 = arith.constant 0 : i32
    return %c0_i32, %c0_i32_0 : i32, i32
  }
  func.func @transform_3(%arg0: i32, %arg1: i32) -> (i32, i32) {
    %c0_i32 = arith.constant 0 : i32
    %c0_i32_0 = arith.constant 0 : i32
    %c0_i32_1 = arith.constant 0 : i32
    return %c0_i32, %c0_i32_0 : i32, i32
  }
  func.func @transform_4(%arg0: i32, %arg1: i32) -> (i32, i32) {
    %c0_i32 = arith.constant 0 : i32
    %c0_i32_0 = arith.constant 0 : i32
    %c0_i32_1 = arith.constant 0 : i32
    return %c0_i32, %c0_i32_0 : i32, i32
  }
  func.func @transform_5(%arg0: i32, %arg1: i32) -> (i32, i32) {
    %c0_i32 = arith.constant 0 : i32
    %c0_i32_0 = arith.constant 0 : i32
    %c0_i32_1 = arith.constant 0 : i32
    return %c0_i32, %c0_i32_0 : i32, i32
  }
  func.func @transform_6(%arg0: i32, %arg1: i32) -> (i32, i32, i32) {
    %c0_i32 = arith.constant 0 : i32
    %c0_i32_0 = arith.constant 0 : i32
    %c0_i32_1 = arith.constant 0 : i32
    return %arg0, %c0_i32, %c0_i32_0 : i32, i32, i32
  }
  func.func @transform_7(%arg0: i32, %arg1: i32) -> (i32, i32, i32) {
    %c0_i32 = arith.constant 0 : i32
    %c0_i32_0 = arith.constant 0 : i32
    return %arg0, %c0_i32, %arg1 : i32, i32, i32
  }
  func.func @transform_8(%arg0: i32, %arg1: i32) -> (i32, i32, i32) {
    %c0_i32 = arith.constant 0 : i32
    %c0_i32_0 = arith.constant 0 : i32
    return %arg0, %arg1, %c0_i32 : i32, i32, i32
  }
}

</mosaic_0001>

<llo_original>
// kernel: tpu_custom_call.1
$region0: #{tpu_custom_call.1}
  #allocation0 [shape = 'u32[]', space=smem, size = 0x4, offset = 0x4, fixed_abs, tag = 'smem constant byte address 0x4 - core index']
  #allocation1 [shape = 'u32[144,128]{1,0:T(1,128)}', space=vmem, size = 0x12000, scoped, tag = 'internal scratch']
  #allocation2 [shape = 'f32[16,256]{1,0:T(8,128)}', space=vmem, size = 0x4000, scoped, tag = 'scratch operand']
  #allocation3 [shape = 'f32[1,256]{1,0:T(1,128)}', space=vmem, size = 0x400, scoped, tag = 'scratch operand']
  #allocation4 [shape = 'bf16[16,256]{1,0:T(16,128)(2,1)}', space=vmem, size = 0x2000, scoped, tag = 'scratch operand']
  %s0 = inlined_call_operand.vmem [shape: f32[2], index: 0, kind: input, shape index: {}]
  %s1 = inlined_call_operand.vmem [shape: f32[16,16], index: 1, kind: input, shape index: {}]
  %s2 = inlined_call_operand.vmem [shape: f32[1,16], index: 2, kind: input, shape index: {}]
  %s3 = inlined_call_operand.vmem [shape: f32[16,1], index: 3, kind: input, shape index: {}]
  %s4 = inlined_call_operand.vmem [shape: f32[16,16], index: 4, kind: input, shape index: {}]
  %s5 = inlined_call_operand.vmem [shape: f32[16,1], index: 5, kind: input, shape index: {}]
  %s6 = inlined_call_operand.hbm [shape: f32[2,16,256], index: 6, kind: input, shape index: {}]
  %s7 = inlined_call_operand.hbm [shape: f32[2,16,256], index: 7, kind: output, shape index: {0}]
  %s8 = inlined_call_operand.hbm [shape: f32[2,256,256], index: 8, kind: output, shape index: {1}]
  %9 = xla_tuple %s7, %s8
  %s10 = sld [smem:[#allocation0]]
  $region81: #{tpu_custom_call.1} parent=0
    _
  %s12 = ssub.s32 1, %s10
  %s13 = scalar_select 0, %s12, %s10
  $region1: #{tpu_custom_call.1} parent=0
    #allocation5 [shape = 'u8[512]{0}', space=smem, size = 0x200, scoped, tag = 'input window, operand 0, single buffered']
    #allocation6 [shape = 's32[2]{0}', space=sflag, size = 0x8, scoped, tag = 'scoped memory for tpu_custom_call.1']
    #allocation7 [shape = 's32[2]{0}', space=sflag, size = 0x8, scoped, tag = 'scoped memory for tpu_custom_call.1']
    #allocation8 [shape = 's32[2]{0}', space=sflag, size = 0x8, scoped, tag = 'scoped memory for tpu_custom_call.1']
    #allocation9 [shape = 'u8[32768]{0}', space=vmem, size = 0x8000, scoped, tag = 'input window, operand 6']
    #allocation10 [shape = 'u8[16384]{0}', space=vmem, size = 0x4000, scoped, tag = 'output window, operand 0']
    #allocation11 [shape = 'u8[262144]{0}', space=vmem, size = 0x40000, scoped, tag = 'output window, operand 1']
    #allocation12 [shape = 's32[2]{0}', space=sflag, size = 0x8, scoped, tag = 'scoped memory for tpu_custom_call.1']
    %14 = vsyncpa [#allocation8], 0
    %15 = vsyncpa [#allocation6], 0
    %s16 = scalar_lea.sflag [#allocation6], 1
    %17 = vsyncpa %s16, 0
    %18 = vsyncpa [#allocation7], 0
    %s19 = scalar_lea.sflag [#allocation7], 1
    %20 = vsyncpa %s19, 0
    %21 = vsyncpa [#allocation12], 0
    %s22 = scalar_lea.sflag [#allocation12], 1
    %23 = vsyncpa %s22, 0
    loop: start=0, step=1, limit=6
    $region2: #{tpu_custom_call.1} parent=1 // loop_pre_header
      _
    $region3: #{tpu_custom_call.1} parent=1 // loop_header
      %s25 = sphi 0, %s29
      %p26 = scmp.ge.s32.totalorder %s25, 6
      %s32 = sphi 0, %s44
      %s33 = sphi 0, %s40
      %s34 = sphi 0, %s32
      %s35 = sphi 0, %s33
      %s36 = sphi 0, %s34
      %s37 = sphi 0, %s35
      %s45 = sphi 0, %s45
      %s47 = sphi 0, %s45
      %s48 = sphi 0, %s47
      %s62 = sphi 0, %s48
      %s66 = sphi 0, %s66
      %s68 = sphi 0, %s66
      %s69 = sphi 0, %s68
      %s83 = sphi 0, %s69
      %s87 = sphi 0, %s87
      %s89 = sphi 0, %s87
      %s90 = sphi 0, %s89
      %s104 = sphi 0, %s90
      %s108 = sphi 0, %s108
      %s110 = sphi 0, %s108
      %s111 = sphi 0, %s110
      %s125 = sphi 0, %s111
      %s129 = sphi 0, %s129
      %s131 = sphi 0, %s129
      %s132 = sphi 0, %s131
      %s146 = sphi 0, %s132
      %s150 = sphi 0, %s150
      %s152 = sphi 0, %s150
      %s153 = sphi 0, %s152
      %s167 = sphi 0, %s153
      %s173 = sphi 0, %s175
      %s176 = sphi 0, %s173
      %s177 = sphi 0, %s176
      %s193 = sphi 0, %s177
      %s201 = sphi 0, %s203
      %s204 = sphi 0, %s201
      %s205 = sphi 0, %s204
      %s221 = sphi 0, %s205
      %s229 = sphi 0, %s231
      %s232 = sphi 0, %s229
      %s233 = sphi 0, %s232
      %s249 = sphi 0, %s233
    $region4: #{tpu_custom_call.1} parent=1 // loop_header_branch
      %28 = sbr.rel (%p26) target = $region8
    $region5: #{tpu_custom_call.1} parent=1 // loop_body
      %s30 = ssub.s32 %s25, 1
      %s31 = ssub.s32 %s25, 2
      %s38 = sadd.s32 1, %s33
      %p39 = scmp.ge.s32.totalorder %s38, 2
      %s40 = scalar_select %p39, 0, %s38
      %s41 = sadd.s32 1, %s32
      %s42 = scalar_select %p39, %s41, %s32
      %p43 = scmp.ge.s32.totalorder %s42, 2
      %s44 = scalar_select %p43, 0, %s42
      %s46 = sadd.s32 %s45, 1
      %p49 = scmp.eq.s32.totalorder %s25, 3
      %p50 = scmp.ne.s32.totalorder %s45, %s47
      %p51 = scmp.eq.s32.totalorder %s25, 0
      %p52 = por %p50, %p51
      %p53 = scmp.ne.s32.totalorder %s45, %s47
      %p54 = scmp.eq.s32.totalorder %s30, 3
      %p55 = por %p53, %p54
      %p56 = scmp.ne.s32.totalorder %s47, %s48
      %p57 = scmp.eq.s32.totalorder %s30, 0
      %p58 = por %p56, %p57
      %p59 = scmp.ne.s32.totalorder %s47, %s48
      %p60 = scmp.eq.s32.totalorder %s31, 3
      %p61 = por %p59, %p60
      %p63 = scmp.ne.s32.totalorder %s48, %s62
      %p64 = scmp.eq.s32.totalorder %s31, 0
      %p65 = por %p63, %p64
      %s67 = sadd.s32 %s66, 1
      %p70 = scmp.eq.s32.totalorder %s25, 3
      %p71 = scmp.ne.s32.totalorder %s66, %s68
      %p72 = scmp.eq.s32.totalorder %s25, 0
      %p73 = por %p71, %p72
      %p74 = scmp.ne.s32.totalorder %s66, %s68
      %p75 = scmp.eq.s32.totalorder %s30, 3
      %p76 = por %p74, %p75
      %p77 = scmp.ne.s32.totalorder %s68, %s69
      %p78 = scmp.eq.s32.totalorder %s30, 0
      %p79 = por %p77, %p78
      %p80 = scmp.ne.s32.totalorder %s68, %s69
      %p81 = scmp.eq.s32.totalorder %s31, 3
      %p82 = por %p80, %p81
      %p84 = scmp.ne.s32.totalorder %s69, %s83
      %p85 = scmp.eq.s32.totalorder %s31, 0
      %p86 = por %p84, %p85
      %s88 = sadd.s32 %s87, 1
      %p91 = scmp.eq.s32.totalorder %s25, 3
      %p92 = scmp.ne.s32.totalorder %s87, %s89
      %p93 = scmp.eq.s32.totalorder %s25, 0
      %p94 = por %p92, %p93
      %p95 = scmp.ne.s32.totalorder %s87, %s89
      %p96 = scmp.eq.s32.totalorder %s30, 3
      %p97 = por %p95, %p96
      %p98 = scmp.ne.s32.totalorder %s89, %s90
      %p99 = scmp.eq.s32.totalorder %s30, 0
      %p100 = por %p98, %p99
      %p101 = scmp.ne.s32.totalorder %s89, %s90
      %p102 = scmp.eq.s32.totalorder %s31, 3
      %p103 = por %p101, %p102
      %p105 = scmp.ne.s32.totalorder %s90, %s104
      %p106 = scmp.eq.s32.totalorder %s31, 0
      %p107 = por %p105, %p106
      %s109 = sadd.s32 %s108, 1
      %p112 = scmp.eq.s32.totalorder %s25, 3
      %p113 = scmp.ne.s32.totalorder %s108, %s110
      %p114 = scmp.eq.s32.totalorder %s25, 0
      %p115 = por %p113, %p114
      %p116 = scmp.ne.s32.totalorder %s108, %s110
      %p117 = scmp.eq.s32.totalorder %s30, 3
      %p118 = por %p116, %p117
      %p119 = scmp.ne.s32.totalorder %s110, %s111
      %p120 = scmp.eq.s32.totalorder %s30, 0
      %p121 = por %p119, %p120
      %p122 = scmp.ne.s32.totalorder %s110, %s111
      %p123 = scmp.eq.s32.totalorder %s31, 3
      %p124 = por %p122, %p123
      %p126 = scmp.ne.s32.totalorder %s111, %s125
      %p127 = scmp.eq.s32.totalorder %s31, 0
      %p128 = por %p126, %p127
      %s130 = sadd.s32 %s129, 1
      %p133 = scmp.eq.s32.totalorder %s25, 3
      %p134 = scmp.ne.s32.totalorder %s129, %s131
      %p135 = scmp.eq.s32.totalorder %s25, 0
      %p136 = por %p134, %p135
      %p137 = scmp.ne.s32.totalorder %s129, %s131
      %p138 = scmp.eq.s32.totalorder %s30, 3
      %p139 = por %p137, %p138
      %p140 = scmp.ne.s32.totalorder %s131, %s132
      %p141 = scmp.eq.s32.totalorder %s30, 0
      %p142 = por %p140, %p141
      %p143 = scmp.ne.s32.totalorder %s131, %s132
      %p144 = scmp.eq.s32.totalorder %s31, 3
      %p145 = por %p143, %p144
      %p147 = scmp.ne.s32.totalorder %s132, %s146
      %p148 = scmp.eq.s32.totalorder %s31, 0
      %p149 = por %p147, %p148
      %s151 = sadd.s32 %s150, 1
      %p154 = scmp.eq.s32.totalorder %s25, 3
      %p155 = scmp.ne.s32.totalorder %s150, %s152
      %p156 = scmp.eq.s32.totalorder %s25, 0
      %p157 = por %p155, %p156
      %p158 = scmp.ne.s32.totalorder %s150, %s152
      %p159 = scmp.eq.s32.totalorder %s30, 3
      %p160 = por %p158, %p159
      %p161 = scmp.ne.s32.totalorder %s152, %s153
      %p162 = scmp.eq.s32.totalorder %s30, 0
      %p163 = por %p161, %p162
      %p164 = scmp.ne.s32.totalorder %s152, %s153
      %p165 = scmp.eq.s32.totalorder %s31, 3
      %p166 = por %p164, %p165
      %p168 = scmp.ne.s32.totalorder %s153, %s167
      %p169 = scmp.eq.s32.totalorder %s31, 0
      %p170 = por %p168, %p169
      %s171 = ssub.s32 %s32, %s44
      %p172 = scmp.eq.s32.totalorder %s171, 0
      %s174 = sadd.s32 %s173, 1
      %s175 = scalar_select %p172, %s173, %s174
      %p178 = pneg %p172
      %p179 = scmp.eq.s32.totalorder %s25, 3
      %p180 = por %p178, %p179
      %p181 = scmp.ne.s32.totalorder %s173, %s176
      %p182 = scmp.eq.s32.totalorder %s25, 0
      %p183 = por %p181, %p182
      %p184 = scmp.ne.s32.totalorder %s173, %s176
      %p185 = scmp.eq.s32.totalorder %s30, 3
      %p186 = por %p184, %p185
      %p187 = scmp.ne.s32.totalorder %s176, %s177
      %p188 = scmp.eq.s32.totalorder %s30, 0
      %p189 = por %p187, %p188
      %p190 = scmp.ne.s32.totalorder %s176, %s177
      %p191 = scmp.eq.s32.totalorder %s31, 3
      %p192 = por %p190, %p191
      %p194 = scmp.ne.s32.totalorder %s177, %s193
      %p195 = scmp.eq.s32.totalorder %s31, 0
      %p196 = por %p194, %p195
      %s197 = ssub.s32 %s32, %s44
      %s198 = ssub.s32 %s33, %s40
      %s199 = sor.u32 %s197, %s198
      %p200 = scmp.eq.s32.totalorder %s199, 0
      %s202 = sadd.s32 %s201, 1
      %s203 = scalar_select %p200, %s201, %s202
      %p206 = pneg %p200
      %p207 = scmp.eq.s32.totalorder %s25, 3
      %p208 = por %p206, %p207
      %p209 = scmp.ne.s32.totalorder %s201, %s204
      %p210 = scmp.eq.s32.totalorder %s25, 0
      %p211 = por %p209, %p210
      %p212 = scmp.ne.s32.totalorder %s201, %s204
      %p213 = scmp.eq.s32.totalorder %s30, 3
      %p214 = por %p212, %p213
      %p215 = scmp.ne.s32.totalorder %s204, %s205
      %p216 = scmp.eq.s32.totalorder %s30, 0
      %p217 = por %p215, %p216
      %p218 = scmp.ne.s32.totalorder %s204, %s205
      %p219 = scmp.eq.s32.totalorder %s31, 3
      %p220 = por %p218, %p219
      %p222 = scmp.ne.s32.totalorder %s205, %s221
      %p223 = scmp.eq.s32.totalorder %s31, 0
      %p224 = por %p222, %p223
      %s225 = ssub.s32 %s32, %s44
      %s226 = ssub.s32 %s33, %s40
      %s227 = sor.u32 %s225, %s226
      %p228 = scmp.eq.s32.totalorder %s227, 0
      %s230 = sadd.s32 %s229, 1
      %s231 = scalar_select %p228, %s229, %s230
      %p234 = pneg %p228
      %p235 = scmp.eq.s32.totalorder %s25, 3
      %p236 = por %p234, %p235
      %p237 = scmp.ne.s32.totalorder %s229, %s232
      %p238 = scmp.eq.s32.totalorder %s25, 0
      %p239 = por %p237, %p238
      %p240 = scmp.ne.s32.totalorder %s229, %s232
      %p241 = scmp.eq.s32.totalorder %s30, 3
      %p242 = por %p240, %p241
      %p243 = scmp.ne.s32.totalorder %s232, %s233
      %p244 = scmp.eq.s32.totalorder %s30, 0
      %p245 = por %p243, %p244
      %p246 = scmp.ne.s32.totalorder %s232, %s233
      %p247 = scmp.eq.s32.totalorder %s31, 3
      %p248 = por %p246, %p247
      %p250 = scmp.ne.s32.totalorder %s233, %s249
      %p251 = scmp.eq.s32.totalorder %s31, 0
      %p252 = por %p250, %p251
      %p253 = scmp.le.s32.totalorder 1, %s25
      %p254 = scmp.lt.s32.totalorder %s25, 5
      %p255 = pnand %p253, %p254
      %p256 = pneg %p255
      // Predicated region
      $region9: #{tpu_custom_call.1} parent=5 // pred_check
        _
      $region10: #{tpu_custom_call.1} parent=5 // pred_check_branch
        %258 = sbr.rel (%p255) target = $region12
      $region11: #{tpu_custom_call.1} parent=5 // pred_region
        %s259 = ssub.s32 %s25, 1
        // Predicated region
        $region13: #{tpu_custom_call.1} parent=11 // pred_check
          %p260 = pneg %p58
        $region14: #{tpu_custom_call.1} parent=11 // pred_check_branch
          %262 = sbr.rel (%p260) target = $region16
        $region15: #{tpu_custom_call.1} parent=11 // pred_region
          %s264 = ssub.s32 16, 16
          %265 = vsyncadd [#allocation8], %s264
          %s267 = sshll.u32 %s0, 4
          %s268 = int_to_ptr.vmem [resolvable:$true] %s267
          %270 = dma.vmem_to_smem %s268, 16, [#allocation5], [#allocation8]
        $region16: #{tpu_custom_call.1} parent=11 // pred_fallthru
          _
        // Predicated region
        $region17: #{tpu_custom_call.1} parent=11 // pred_check
          %p271 = pneg %p79
        $region18: #{tpu_custom_call.1} parent=11 // pred_check_branch
          %273 = sbr.rel (%p271) target = $region20
        $region19: #{tpu_custom_call.1} parent=11 // pred_region
          _
        $region20: #{tpu_custom_call.1} parent=11 // pred_fallthru
          _
        // Predicated region
        $region21: #{tpu_custom_call.1} parent=11 // pred_check
          %p274 = pneg %p100
        $region22: #{tpu_custom_call.1} parent=11 // pred_check_branch
          %276 = sbr.rel (%p274) target = $region24
        $region23: #{tpu_custom_call.1} parent=11 // pred_region
          _
        $region24: #{tpu_custom_call.1} parent=11 // pred_fallthru
          _
        // Predicated region
        $region25: #{tpu_custom_call.1} parent=11 // pred_check
          %p277 = pneg %p121
        $region26: #{tpu_custom_call.1} parent=11 // pred_check_branch
          %279 = sbr.rel (%p277) target = $region28
        $region27: #{tpu_custom_call.1} parent=11 // pred_region
          _
        $region28: #{tpu_custom_call.1} parent=11 // pred_fallthru
          _
        // Predicated region
        $region29: #{tpu_custom_call.1} parent=11 // pred_check
          %p280 = pneg %p142
        $region30: #{tpu_custom_call.1} parent=11 // pred_check_branch
          %282 = sbr.rel (%p280) target = $region32
        $region31: #{tpu_custom_call.1} parent=11 // pred_region
          _
        $region32: #{tpu_custom_call.1} parent=11 // pred_fallthru
          _
        // Predicated region
        $region33: #{tpu_custom_call.1} parent=11 // pred_check
          %p283 = pneg %p163
        $region34: #{tpu_custom_call.1} parent=11 // pred_check_branch
          %285 = sbr.rel (%p283) target = $region36
        $region35: #{tpu_custom_call.1} parent=11 // pred_region
          _
        $region36: #{tpu_custom_call.1} parent=11 // pred_fallthru
          _
      $region12: #{tpu_custom_call.1} parent=5 // pred_fallthru
        _
      %p286 = scmp.lt.s32.totalorder %s25, 4
      // Predicated region
      $region37: #{tpu_custom_call.1} parent=5 // pred_check
        %p287 = pneg %p286
      $region38: #{tpu_custom_call.1} parent=5 // pred_check_branch
        %289 = sbr.rel (%p287) target = $region40
      $region39: #{tpu_custom_call.1} parent=5 // pred_region
        // Predicated region
        $region41: #{tpu_custom_call.1} parent=39 // pred_check
          %p290 = pneg %p183
        $region42: #{tpu_custom_call.1} parent=39 // pred_check_branch
          %292 = sbr.rel (%p290) target = $region44
        $region43: #{tpu_custom_call.1} parent=39 // pred_region
          %s293 = sand.u32 %s173, 1
          %s294 = scalar_lea.sflag [#allocation6], %s293
          %s295 = sand.u32 %s173, 1
          %s296 = smul.addr %s295, 32
          %s297 = scalar_lea.vmem [#allocation9], %s296
          %s299 = ssub.s32 512, 512
          %300 = vsyncadd %s294, %s299
          %s301 = smul.addr %s32, 4
          %s302 = smul.addr %s301, 128
          %s303 = scalar_lea.hbm %s6, %s302
          %s304 = sshll.u32 %s297, 4
          %s305 = int_to_ptr.vmem [resolvable:$true] %s304
          %310 = dma.hbm_to_vmem [thread:$0]  %s303, 512, %s305, %s294, 256, 256, 16
        $region44: #{tpu_custom_call.1} parent=39 // pred_fallthru
          _
      $region40: #{tpu_custom_call.1} parent=5 // pred_fallthru
        _
      %p311 = scmp.le.s32.totalorder 1, %s25
      %p312 = scmp.lt.s32.totalorder %s25, 5
      %p313 = pnand %p311, %p312
      %p314 = pneg %p313
      // Predicated region
      $region45: #{tpu_custom_call.1} parent=5 // pred_check
        _
      $region46: #{tpu_custom_call.1} parent=5 // pred_check_branch
        %316 = sbr.rel (%p313) target = $region48
      $region47: #{tpu_custom_call.1} parent=5 // pred_region
        %s317 = ssub.s32 %s25, 1
        // Predicated region
        $region49: #{tpu_custom_call.1} parent=47 // pred_check
          %p318 = pneg %p58
        $region50: #{tpu_custom_call.1} parent=47 // pred_check_branch
          %320 = sbr.rel (%p318) target = $region52
        $region51: #{tpu_custom_call.1} parent=47 // pred_region
          %321 = dma.done [#allocation8], 16
        $region52: #{tpu_custom_call.1} parent=47 // pred_fallthru
          _
        %s322 = sand.u32 %s176, 1
        %s323 = scalar_lea.sflag [#allocation6], %s322
        %s324 = sand.u32 %s176, 1
        %s325 = smul.addr %s324, 32
        %s326 = scalar_lea.vmem [#allocation9], %s325
        // Predicated region
        $region53: #{tpu_custom_call.1} parent=47 // pred_check
          %p327 = pneg %p189
        $region54: #{tpu_custom_call.1} parent=47 // pred_check_branch
          %329 = sbr.rel (%p327) target = $region56
        $region55: #{tpu_custom_call.1} parent=47 // pred_region
          %330 = dma.done %s323, 512
        $region56: #{tpu_custom_call.1} parent=47 // pred_fallthru
          _
        %331 = sfence
        %p332 = pneg %p58
        %p333 = pneg %p55
        %p334 = pneg %p79
        %p335 = pneg %p76
        %p336 = pneg %p100
        %p337 = pneg %p97
        %p338 = pneg %p121
        %p339 = pneg %p118
        %p340 = pneg %p142
        %p341 = pneg %p139
        %p342 = pneg %p163
        %p343 = pneg %p160
        %s344 = sand.u32 %s176, 1
        %s345 = scalar_lea.sflag [#allocation6], %s344
        %s346 = sand.u32 %s176, 1
        %s347 = smul.addr %s346, 32
        %s348 = scalar_lea.vmem [#allocation9], %s347
        %p349 = pneg %p189
        %p350 = pneg %p186
        %p351 = pneg %p217
        %p352 = pneg %p214
        %s353 = sand.u32 %s204, 1
        %s354 = scalar_lea.sflag [#allocation7], %s353
        %s355 = sand.u32 %s204, 1
        %s356 = smul.addr %s355, 16
        %s357 = scalar_lea.vmem [#allocation10], %s356
        %p358 = pneg %p245
        %p359 = pneg %p242
        %s360 = sand.u32 %s232, 1
        %s361 = scalar_lea.sflag [#allocation12], %s360
        %s362 = sand.u32 %s232, 1
        %s363 = smul.addr %s362, 256
        %s364 = scalar_lea.vmem [#allocation11], %s363
        %s365 = smul.u32 16, %s35
        %p367 = scmp.eq.s32.totalorder %s35, 0
        // Predicated region
        $region57: #{tpu_custom_call.1} parent=47 // pred_check
          %p368 = pneg %p367
        $region58: #{tpu_custom_call.1} parent=47 // pred_check_branch
          %370 = sbr.rel (%p368) target = $region60
        $region59: #{tpu_custom_call.1} parent=47 // pred_region
          %v371 = vld [vmem:[%s326] sm:$0xff]
          %v372 = vld [vmem:[%s326 + $0x8] sm:$0xff]
          %v373 = vld [vmem:[%s326 + $0x10] sm:$0xff]
          %v374 = vld [vmem:[%s326 + $0x18] sm:$0xff]
          %v375 = vld [vmem:[%s1] sm:$0xff]
          %v376 = vld [vmem:[%s1 + $0x8] sm:$0xff]
          %v377 = vld [vmem:[%s3] sm:$0xff]
          %v378 = vld [vmem:[%s3 + $0x8] sm:$0xff]
          %380 = vset.pattern.permute.xlu0 0
          %381 = vperm.xlu0 %380, %v377
          %v382 = vpop.permute.xlu0 %381
          %385 = vset.pattern.permute.xlu0 0
          %386 = vperm.xlu0 %385, %v378
          %v387 = vpop.permute.xlu0 %386
          %vm389 = vcmask 130048
          %v391 = vsel %vm389, %v375, 0
          %v394 = vsel %vm389, %v376, 0
          %396 = vmatprep.subr.mxu0 %v372
          %397 = vmatpush1.msra.mxu0 %v371
          %398 = vmatprep.subr.mxu0 %v374
          %399 = vmatpush1.msra.mxu0 %v373
          %400 = vmatprep.subr.mxu0 0.0
          %401 = vmatpush1.msra.mxu0 0.0
          %402 = vmatprep.subr.mxu0 0.0
          %403 = vmatpush1.msra.mxu0 0.0
          %404 = vmatprep.subr.mxu0 0.0
          %405 = vmatpush1.msra.mxu0 0.0
          %406 = vmatprep.subr.mxu0 0.0
          %407 = vmatpush1.msra.mxu0 0.0
          %408 = vmatprep.subr.mxu0 0.0
          %409 = vmatpush1.msra.mxu0 0.0
          %410 = vmatprep.subr.mxu0 0.0
          %411 = vmatpush1.msra.mxu0 0.0
          %412 = vmatprep.subr.mxu0 0.0
          %413 = vmatpush1.msra.mxu0 0.0
          %414 = vmatprep.subr.mxu0 0.0
          %415 = vmatpush1.msra.mxu0 0.0
          %416 = vmatprep.subr.mxu0 0.0
          %417 = vmatpush1.msra.mxu0 0.0
          %418 = vmatprep.subr.mxu0 0.0
          %419 = vmatpush1.msra.mxu0 0.0
          %420 = vmatprep.subr.mxu0 0.0
          %421 = vmatpush1.msra.mxu0 0.0
          %422 = vmatprep.subr.mxu0 0.0
          %423 = vmatpush1.msra.mxu0 0.0
          %424 = vmatprep.subr.mxu0 0.0
          %425 = vmatpush1.msra.mxu0 0.0
          %426 = vmatprep.subr.mxu0 0.0
          %427 = vmatpush1.msra.mxu0 0.0
          %428 = vmatprep.subr.mxu0 0.0
          %429 = vmatpush1.msra.mxu0 0.0
          %430 = vmatprep.subr.mxu0 0.0
          %431 = vmatpush1.msra.mxu0 0.0
          %432 = vmatprep.subr.mxu0 0.0
          %433 = vmatpush1.msra.mxu0 0.0
          %434 = vmatprep.subr.mxu0 0.0
          %435 = vmatpush1.msra.mxu0 0.0
          %436 = vmatprep.subr.mxu0 0.0
          %437 = vmatpush1.msra.mxu0 0.0
          %438 = vmatprep.subr.mxu0 0.0
          %439 = vmatpush1.msra.mxu0 0.0
          %440 = vmatprep.subr.mxu0 0.0
          %441 = vmatpush1.msra.mxu0 0.0
          %442 = vmatprep.subr.mxu0 0.0
          %443 = vmatpush1.msra.mxu0 0.0
          %444 = vmatprep.subr.mxu0 0.0
          %445 = vmatpush1.msra.mxu0 0.0
          %446 = vmatprep.subr.mxu0 0.0
          %447 = vmatpush1.msra.mxu0 0.0
          %448 = vmatprep.subr.mxu0 0.0
          %449 = vmatpush1.msra.mxu0 0.0
          %450 = vmatprep.subr.mxu0 0.0
          %451 = vmatpush1.msra.mxu0 0.0
          %452 = vmatprep.subr.mxu0 0.0
          %453 = vmatpush1.msra.mxu0 0.0
          %454 = vmatprep.subr.mxu0 0.0
          %455 = vmatpush1.msra.mxu0 0.0
          %456 = vmatprep.subr.mxu0 0.0
          %457 = vmatpush1.msra.mxu0 0.0
          %458 = vmatprep.subr.mxu0 0.0
          %459 = vmatpush1.msra.mxu0 0.0
          %460 = vmatprep.mubr.f32.mxu0 0.0
          %461 = vmatmul.mubr.f32.gmra.mrb[0].mxu0 %v391
          %v462 = vpop.f32.mrb[0].mxu0
          %v463 = vadd.f32 %v382, %v462
          %v464 = vpop.f32.mrb[0].mxu0
          %v465 = vadd.f32 %v382, %v464
          %466 = vmatprep.mubr.f32.mxu0 0.0
          %467 = vmatmul.mubr.f32.gmra.mrb[0].mxu0 %v394
          %v468 = vpop.f32.mrb[0].mxu0
          %v469 = vadd.f32 %v387, %v468
          %v470 = vpop.f32.mrb[0].mxu0
          %v471 = vadd.f32 %v387, %v470
          %472 = vdwg.mxu0
          %473 = vst [vmem:[#allocation2] sm:$0xff] %v463
          %474 = vst [vmem:[#allocation2 + $0x8] sm:$0xff] %v465
          %475 = vst [vmem:[#allocation2 + $0x10] sm:$0xff] %v469
          %476 = vst [vmem:[#allocation2 + $0x18] sm:$0xff] %v471
          %v477 = vld [vmem:[%s2] sm:$0x1]
          %s478 = sld [smem:[#allocation5 + $0x1]]
          %v479 = vstv %s478
          %v481 = vsel %vm389, %v477, 0
          %483 = vmatprep.subr.mxu0 %v372
          %484 = vmatpush1.msra.mxu0 %v371
          %485 = vmatprep.subr.mxu0 %v374
          %486 = vmatpush1.msra.mxu0 %v373
          %487 = vmatprep.subr.mxu0 0.0
          %488 = vmatpush1.msra.mxu0 0.0
          %489 = vmatprep.subr.mxu0 0.0
          %490 = vmatpush1.msra.mxu0 0.0
          %491 = vmatprep.subr.mxu0 0.0
          %492 = vmatpush1.msra.mxu0 0.0
          %493 = vmatprep.subr.mxu0 0.0
          %494 = vmatpush1.msra.mxu0 0.0
          %495 = vmatprep.subr.mxu0 0.0
          %496 = vmatpush1.msra.mxu0 0.0
          %497 = vmatprep.subr.mxu0 0.0
          %498 = vmatpush1.msra.mxu0 0.0
          %499 = vmatprep.subr.mxu0 0.0
          %500 = vmatpush1.msra.mxu0 0.0
          %501 = vmatprep.subr.mxu0 0.0
          %502 = vmatpush1.msra.mxu0 0.0
          %503 = vmatprep.subr.mxu0 0.0
          %504 = vmatpush1.msra.mxu0 0.0
          %505 = vmatprep.subr.mxu0 0.0
          %506 = vmatpush1.msra.mxu0 0.0
          %507 = vmatprep.subr.mxu0 0.0
          %508 = vmatpush1.msra.mxu0 0.0
          %509 = vmatprep.subr.mxu0 0.0
          %510 = vmatpush1.msra.mxu0 0.0
          %511 = vmatprep.subr.mxu0 0.0
          %512 = vmatpush1.msra.mxu0 0.0
          %513 = vmatprep.subr.mxu0 0.0
          %514 = vmatpush1.msra.mxu0 0.0
          %515 = vmatprep.subr.mxu0 0.0
          %516 = vmatpush1.msra.mxu0 0.0
          %517 = vmatprep.subr.mxu0 0.0
          %518 = vmatpush1.msra.mxu0 0.0
          %519 = vmatprep.subr.mxu0 0.0
          %520 = vmatpush1.msra.mxu0 0.0
          %521 = vmatprep.subr.mxu0 0.0
          %522 = vmatpush1.msra.mxu0 0.0
          %523 = vmatprep.subr.mxu0 0.0
          %524 = vmatpush1.msra.mxu0 0.0
          %525 = vmatprep.subr.mxu0 0.0
          %526 = vmatpush1.msra.mxu0 0.0
          %527 = vmatprep.subr.mxu0 0.0
          %528 = vmatpush1.msra.mxu0 0.0
          %529 = vmatprep.subr.mxu0 0.0
          %530 = vmatpush1.msra.mxu0 0.0
          %531 = vmatprep.subr.mxu0 0.0
          %532 = vmatpush1.msra.mxu0 0.0
          %533 = vmatprep.subr.mxu0 0.0
          %534 = vmatpush1.msra.mxu0 0.0
          %535 = vmatprep.subr.mxu0 0.0
          %536 = vmatpush1.msra.mxu0 0.0
          %537 = vmatprep.subr.mxu0 0.0
          %538 = vmatpush1.msra.mxu0 0.0
          %539 = vmatprep.subr.mxu0 0.0
          %540 = vmatpush1.msra.mxu0 0.0
          %541 = vmatprep.subr.mxu0 0.0
          %542 = vmatpush1.msra.mxu0 0.0
          %543 = vmatprep.subr.mxu0 0.0
          %544 = vmatpush1.msra.mxu0 0.0
          %545 = vmatprep.subr.mxu0 0.0
          %546 = vmatpush1.msra.mxu0 0.0
          %547 = vmatprep.mubr.f32.mxu0 0.0
          %548 = vmatmul.mubr.f32.gmra.mrb[0].mxu0 %v481
          %v549 = vpop.f32.mrb[0].mxu0
          %v550 = vadd.f32 %v479, %v549
          %v551 = vpop.f32.mrb[0].mxu0
          %v552 = vadd.f32 %v479, %v551
          %553 = vdwg.mxu0
          %v556 = vcombine.low %v550, %v552
          %v558 = vunpack.c.l.s4 1966171168
          %v559 = vunpack.c.0.s8 %v558
          %v560 = vlaneseq
          %v561 = vshrl.u32 %v560, 7
          %v562 = vsub.s32 %v559, %v561
          %v563 = vrot.slane %v556, %v562
          %v565 = vunpack.c.l.s4 1966171168
          %v566 = vunpack.c.0.s8 %v565
          %v567 = vlaneseq
          %v568 = vshrl.u32 %v567, 7
          %v569 = vsub.s32 %v566, %v568
          %v570 = vrot.slane %v563, %v569
          %v572 = vlaneseq
          %vm573 = vcmp.ge.s32.totalorder %v572, 0
          %vm574 = vcmp.lt.s32.totalorder %v572, 256
          %vm575 = vmand %vm573, %vm574
          %576 = vst.msk [vmem:[#allocation3] sm:$0x3] %vm575, %v570
          %v577 = vld [vmem:[%s4] sm:$0xff]
          %v578 = vld [vmem:[%s4 + $0x8] sm:$0xff]
          %v579 = vld [vmem:[%s5] sm:$0xff]
          %v580 = vld [vmem:[%s5 + $0x8] sm:$0xff]
          %582 = vset.pattern.permute.xlu0 0
          %583 = vperm.xlu0 %582, %v579
          %v584 = vpop.permute.xlu0 %583
          %587 = vset.pattern.permute.xlu0 0
          %588 = vperm.xlu0 %587, %v580
          %v589 = vpop.permute.xlu0 %588
          %v592 = vsel %vm389, %v577, 0
          %v595 = vsel %vm389, %v578, 0
          %597 = vmatprep.subr.mxu0 %v372
          %598 = vmatpush1.msra.mxu0 %v371
          %599 = vmatprep.subr.mxu0 %v374
          %600 = vmatpush1.msra.mxu0 %v373
          %601 = vmatprep.subr.mxu0 0.0
          %602 = vmatpush1.msra.mxu0 0.0
          %603 = vmatprep.subr.mxu0 0.0
          %604 = vmatpush1.msra.mxu0 0.0
          %605 = vmatprep.subr.mxu0 0.0
          %606 = vmatpush1.msra.mxu0 0.0
          %607 = vmatprep.subr.mxu0 0.0
          %608 = vmatpush1.msra.mxu0 0.0
          %609 = vmatprep.subr.mxu0 0.0
          %610 = vmatpush1.msra.mxu0 0.0
          %611 = vmatprep.subr.mxu0 0.0
          %612 = vmatpush1.msra.mxu0 0.0
          %613 = vmatprep.subr.mxu0 0.0
          %614 = vmatpush1.msra.mxu0 0.0
          %615 = vmatprep.subr.mxu0 0.0
          %616 = vmatpush1.msra.mxu0 0.0
          %617 = vmatprep.subr.mxu0 0.0
          %618 = vmatpush1.msra.mxu0 0.0
          %619 = vmatprep.subr.mxu0 0.0
          %620 = vmatpush1.msra.mxu0 0.0
          %621 = vmatprep.subr.mxu0 0.0
          %622 = vmatpush1.msra.mxu0 0.0
          %623 = vmatprep.subr.mxu0 0.0
          %624 = vmatpush1.msra.mxu0 0.0
          %625 = vmatprep.subr.mxu0 0.0
          %626 = vmatpush1.msra.mxu0 0.0
          %627 = vmatprep.subr.mxu0 0.0
          %628 = vmatpush1.msra.mxu0 0.0
          %629 = vmatprep.subr.mxu0 0.0
          %630 = vmatpush1.msra.mxu0 0.0
          %631 = vmatprep.subr.mxu0 0.0
          %632 = vmatpush1.msra.mxu0 0.0
          %633 = vmatprep.subr.mxu0 0.0
          %634 = vmatpush1.msra.mxu0 0.0
          %635 = vmatprep.subr.mxu0 0.0
          %636 = vmatpush1.msra.mxu0 0.0
          %637 = vmatprep.subr.mxu0 0.0
          %638 = vmatpush1.msra.mxu0 0.0
          %639 = vmatprep.subr.mxu0 0.0
          %640 = vmatpush1.msra.mxu0 0.0
          %641 = vmatprep.subr.mxu0 0.0
          %642 = vmatpush1.msra.mxu0 0.0
          %643 = vmatprep.subr.mxu0 0.0
          %644 = vmatpush1.msra.mxu0 0.0
          %645 = vmatprep.subr.mxu0 0.0
          %646 = vmatpush1.msra.mxu0 0.0
          %647 = vmatprep.subr.mxu0 0.0
          %648 = vmatpush1.msra.mxu0 0.0
          %649 = vmatprep.subr.mxu0 0.0
          %650 = vmatpush1.msra.mxu0 0.0
          %651 = vmatprep.subr.mxu0 0.0
          %652 = vmatpush1.msra.mxu0 0.0
          %653 = vmatprep.subr.mxu0 0.0
          %654 = vmatpush1.msra.mxu0 0.0
          %655 = vmatprep.subr.mxu0 0.0
          %656 = vmatpush1.msra.mxu0 0.0
          %657 = vmatprep.subr.mxu0 0.0
          %658 = vmatpush1.msra.mxu0 0.0
          %659 = vmatprep.subr.mxu0 0.0
          %660 = vmatpush1.msra.mxu0 0.0
          %661 = vmatprep.mubr.f32.mxu0 0.0
          %662 = vmatmul.mubr.f32.gmra.mrb[0].mxu0 %v592
          %v663 = vpop.f32.mrb[0].mxu0
          %v664 = vadd.f32 %v584, %v663
          %v665 = vpop.f32.mrb[0].mxu0
          %v666 = vadd.f32 %v584, %v665
          %667 = vmatprep.mubr.f32.mxu0 0.0
          %668 = vmatmul.mubr.f32.gmra.mrb[0].mxu0 %v595
          %v669 = vpop.f32.mrb[0].mxu0
          %v670 = vadd.f32 %v589, %v669
          %v671 = vpop.f32.mrb[0].mxu0
          %v672 = vadd.f32 %v589, %v671
          %673 = vdwg.mxu0
          %v674 = vpack.c.bf16 %v670, %v664
          %v675 = vpack.c.bf16 %v672, %v666
          %676 = vst [vmem:[#allocation4] sm:$0xff] %v674
          %677 = vst [vmem:[#allocation4 + $0x8] sm:$0xff] %v675
        $region60: #{tpu_custom_call.1} parent=47 // pred_fallthru
          _
        %s678 = smul.u32 %s35, 128
        %s679 = sshra.s32 %s678, 7
        %s680 = sand.u32 %s678, 127
        %s681 = smul.addr %s679, 8
        %s682 = scalar_lea.vmem %s326, %s681 [#allocation9]
        %v683 = vld [vmem:[%s682] sm:$0xff]
        %v684 = vld [vmem:[%s682 + $0x10] sm:$0xff]
        %v685 = vld [vmem:[#allocation2] sm:$0xff]
        %v686 = vld [vmem:[#allocation2 + $0x8] sm:$0xff]
        %v687 = vld [vmem:[#allocation2 + $0x10] sm:$0xff]
        %v688 = vld [vmem:[#allocation2 + $0x18] sm:$0xff]
        %v689 = vld [vmem:[#allocation3] sm:$0x3]
        %v691 = vlaneseq
        %v692 = vshrl.u32 %v691, 7
        %v693 = vsub.s32 0, %v692
        %v694 = vrot.slane %v689, %v693
        %v695 = vlaneseq
        %v696 = vshrl.u32 %v695, 7
        %v697 = vsub.s32 1, %v696
        %v698 = vrot.slane %v689, %v697
        %701 = vxpose.xlu0.b32.start [1/16] %v683, 128
        %702 = vxpose.xlu0.b32.cont [2/16] %v684, 128
        %703 = vxpose.xlu0.b32.cont [3/16] 0.0, 128
        %704 = vxpose.xlu0.b32.cont [4/16] 0.0, 128
        %705 = vxpose.xlu0.b32.cont [5/16] 0.0, 128
        %706 = vxpose.xlu0.b32.cont [6/16] 0.0, 128
        %707 = vxpose.xlu0.b32.cont [7/16] 0.0, 128
        %708 = vxpose.xlu0.b32.cont [8/16] 0.0, 128
        %709 = vxpose.xlu0.b32.cont [9/16] 0.0, 128
        %710 = vxpose.xlu0.b32.cont [10/16] 0.0, 128
        %711 = vxpose.xlu0.b32.cont [11/16] 0.0, 128
        %712 = vxpose.xlu0.b32.cont [12/16] 0.0, 128
        %713 = vxpose.xlu0.b32.cont [13/16] 0.0, 128
        %714 = vxpose.xlu0.b32.cont [14/16] 0.0, 128
        %715 = vxpose.xlu0.b32.cont [15/16] 0.0, 128
        %716 = vxpose.xlu0.b32.end [16/16] 0.0, 128
        %v717 = vpop.trf.xlu0
        %v718 = vpop.trf.xlu0
        %v719 = vpop.trf.xlu0
        %v720 = vpop.trf.xlu0
        %v721 = vpop.trf.xlu0
        %v722 = vpop.trf.xlu0
        %v723 = vpop.trf.xlu0
        %v724 = vpop.trf.xlu0
        %v725 = vpop.trf.xlu0
        %v726 = vpop.trf.xlu0
        %v727 = vpop.trf.xlu0
        %v728 = vpop.trf.xlu0
        %v729 = vpop.trf.xlu0
        %v730 = vpop.trf.xlu0
        %v731 = vpop.trf.xlu0
        %v732 = vpop.trf.xlu0
        %vm733 = vcmask 130048
        %v735 = vsel %vm733, %v717, 0
        %v738 = vsel %vm733, %v718, 0
        %v741 = vsel %vm733, %v719, 0
        %v744 = vsel %vm733, %v720, 0
        %v747 = vsel %vm733, %v721, 0
        %v750 = vsel %vm733, %v722, 0
        %v753 = vsel %vm733, %v723, 0
        %v756 = vsel %vm733, %v724, 0
        %v759 = vsel %vm733, %v725, 0
        %v762 = vsel %vm733, %v726, 0
        %v765 = vsel %vm733, %v727, 0
        %v768 = vsel %vm733, %v728, 0
        %v771 = vsel %vm733, %v729, 0
        %v774 = vsel %vm733, %v730, 0
        %v777 = vsel %vm733, %v731, 0
        %v780 = vsel %vm733, %v732, 0
        %782 = vmatprep.subr.mxu0 %v686
        %783 = vmatpush1.msra.mxu0 %v685
        %784 = vmatprep.subr.mxu0 %v688
        %785 = vmatpush1.msra.mxu0 %v687
        %786 = vmatprep.subr.mxu0 0.0
        %787 = vmatpush1.msra.mxu0 0.0
        %788 = vmatprep.subr.mxu0 0.0
        %789 = vmatpush1.msra.mxu0 0.0
        %790 = vmatprep.subr.mxu0 0.0
        %791 = vmatpush1.msra.mxu0 0.0
        %792 = vmatprep.subr.mxu0 0.0
        %793 = vmatpush1.msra.mxu0 0.0
        %794 = vmatprep.subr.mxu0 0.0
        %795 = vmatpush1.msra.mxu0 0.0
        %796 = vmatprep.subr.mxu0 0.0
        %797 = vmatpush1.msra.mxu0 0.0
        %798 = vmatprep.subr.mxu0 0.0
        %799 = vmatpush1.msra.mxu0 0.0
        %800 = vmatprep.subr.mxu0 0.0
        %801 = vmatpush1.msra.mxu0 0.0
        %802 = vmatprep.subr.mxu0 0.0
        %803 = vmatpush1.msra.mxu0 0.0
        %804 = vmatprep.subr.mxu0 0.0
        %805 = vmatpush1.msra.mxu0 0.0
        %806 = vmatprep.subr.mxu0 0.0
        %807 = vmatpush1.msra.mxu0 0.0
        %808 = vmatprep.subr.mxu0 0.0
        %809 = vmatpush1.msra.mxu0 0.0
        %810 = vmatprep.subr.mxu0 0.0
        %811 = vmatpush1.msra.mxu0 0.0
        %812 = vmatprep.subr.mxu0 0.0
        %813 = vmatpush1.msra.mxu0 0.0
        %814 = vmatprep.subr.mxu0 0.0
        %815 = vmatpush1.msra.mxu0 0.0
        %816 = vmatprep.subr.mxu0 0.0
        %817 = vmatpush1.msra.mxu0 0.0
        %818 = vmatprep.subr.mxu0 0.0
        %819 = vmatpush1.msra.mxu0 0.0
        %820 = vmatprep.subr.mxu0 0.0
        %821 = vmatpush1.msra.mxu0 0.0
        %822 = vmatprep.subr.mxu0 0.0
        %823 = vmatpush1.msra.mxu0 0.0
        %824 = vmatprep.subr.mxu0 0.0
        %825 = vmatpush1.msra.mxu0 0.0
        %826 = vmatprep.subr.mxu0 0.0
        %827 = vmatpush1.msra.mxu0 0.0
        %828 = vmatprep.subr.mxu0 0.0
        %829 = vmatpush1.msra.mxu0 0.0
        %830 = vmatprep.subr.mxu0 0.0
        %831 = vmatpush1.msra.mxu0 0.0
        %832 = vmatprep.subr.mxu0 0.0
        %833 = vmatpush1.msra.mxu0 0.0
        %834 = vmatprep.subr.mxu0 0.0
        %835 = vmatpush1.msra.mxu0 0.0
        %836 = vmatprep.subr.mxu0 0.0
        %837 = vmatpush1.msra.mxu0 0.0
        %838 = vmatprep.subr.mxu0 0.0
        %839 = vmatpush1.msra.mxu0 0.0
        %840 = vmatprep.subr.mxu0 0.0
        %841 = vmatpush1.msra.mxu0 0.0
        %842 = vmatprep.subr.mxu0 0.0
        %843 = vmatpush1.msra.mxu0 0.0
        %844 = vmatprep.subr.mxu0 0.0
        %845 = vmatpush1.msra.mxu0 0.0
        %846 = vmatprep.mubr.f32.mxu0 0.0
        %847 = vmatmul.mubr.f32.gmra.mrb[0].mxu0 %v735
        %v848 = vpop.f32.mrb[0].mxu0
        %v849 = vadd.f32 %v694, %v848
        %v850 = vpop.f32.mrb[0].mxu0
        %v851 = vadd.f32 %v698, %v850
        %852 = vmatprep.mubr.f32.mxu0 0.0
        %853 = vmatmul.mubr.f32.gmra.mrb[0].mxu0 %v738
        %v854 = vpop.f32.mrb[0].mxu0
        %v855 = vadd.f32 %v694, %v854
        %v856 = vpop.f32.mrb[0].mxu0
        %v857 = vadd.f32 %v698, %v856
        %858 = vmatprep.mubr.f32.mxu0 0.0
        %859 = vmatmul.mubr.f32.gmra.mrb[0].mxu0 %v741
        %v860 = vpop.f32.mrb[0].mxu0
        %v861 = vadd.f32 %v694, %v860
        %v862 = vpop.f32.mrb[0].mxu0
        %v863 = vadd.f32 %v698, %v862
        %864 = vmatprep.mubr.f32.mxu0 0.0
        %865 = vmatmul.mubr.f32.gmra.mrb[0].mxu0 %v744
        %v866 = vpop.f32.mrb[0].mxu0
        %v867 = vadd.f32 %v694, %v866
        %v868 = vpop.f32.mrb[0].mxu0
        %v869 = vadd.f32 %v698, %v868
        %870 = vmatprep.mubr.f32.mxu0 0.0
        %871 = vmatmul.mubr.f32.gmra.mrb[0].mxu0 %v747
        %v872 = vpop.f32.mrb[0].mxu0
        %v873 = vadd.f32 %v694, %v872
        %v874 = vpop.f32.mrb[0].mxu0
        %v875 = vadd.f32 %v698, %v874
        %876 = vmatprep.mubr.f32.mxu0 0.0
        %877 = vmatmul.mubr.f32.gmra.mrb[0].mxu0 %v750
        %v878 = vpop.f32.mrb[0].mxu0
        %v879 = vadd.f32 %v694, %v878
        %v880 = vpop.f32.mrb[0].mxu0
        %v881 = vadd.f32 %v698, %v880
        %882 = vmatprep.mubr.f32.mxu0 0.0
        %883 = vmatmul.mubr.f32.gmra.mrb[0].mxu0 %v753
        %v884 = vpop.f32.mrb[0].mxu0
        %v885 = vadd.f32 %v694, %v884
        %v886 = vpop.f32.mrb[0].mxu0
        %v887 = vadd.f32 %v698, %v886
        %888 = vmatprep.mubr.f32.mxu0 0.0
        %889 = vmatmul.mubr.f32.gmra.mrb[0].mxu0 %v756
        %v890 = vpop.f32.mrb[0].mxu0
        %v891 = vadd.f32 %v694, %v890
        %v892 = vpop.f32.mrb[0].mxu0
        %v893 = vadd.f32 %v698, %v892
        %894 = vmatprep.mubr.f32.mxu0 0.0
        %895 = vmatmul.mubr.f32.gmra.mrb[0].mxu0 %v759
        %v896 = vpop.f32.mrb[0].mxu0
        %v897 = vadd.f32 %v694, %v896
        %v898 = vpop.f32.mrb[0].mxu0
        %v899 = vadd.f32 %v698, %v898
        %900 = vmatprep.mubr.f32.mxu0 0.0
        %901 = vmatmul.mubr.f32.gmra.mrb[0].mxu0 %v762
        %v902 = vpop.f32.mrb[0].mxu0
        %v903 = vadd.f32 %v694, %v902
        %v904 = vpop.f32.mrb[0].mxu0
        %v905 = vadd.f32 %v698, %v904
        %906 = vmatprep.mubr.f32.mxu0 0.0
        %907 = vmatmul.mubr.f32.gmra.mrb[0].mxu0 %v765
        %v908 = vpop.f32.mrb[0].mxu0
        %v909 = vadd.f32 %v694, %v908
        %v910 = vpop.f32.mrb[0].mxu0
        %v911 = vadd.f32 %v698, %v910
        %912 = vmatprep.mubr.f32.mxu0 0.0
        %913 = vmatmul.mubr.f32.gmra.mrb[0].mxu0 %v768
        %v914 = vpop.f32.mrb[0].mxu0
        %v915 = vadd.f32 %v694, %v914
        %v916 = vpop.f32.mrb[0].mxu0
        %v917 = vadd.f32 %v698, %v916
        %918 = vmatprep.mubr.f32.mxu0 0.0
        %919 = vmatmul.mubr.f32.gmra.mrb[0].mxu0 %v771
        %v920 = vpop.f32.mrb[0].mxu0
        %v921 = vadd.f32 %v694, %v920
        %v922 = vpop.f32.mrb[0].mxu0
        %v923 = vadd.f32 %v698, %v922
        %924 = vmatprep.mubr.f32.mxu0 0.0
        %925 = vmatmul.mubr.f32.gmra.mrb[0].mxu0 %v774
        %v926 = vpop.f32.mrb[0].mxu0
        %v927 = vadd.f32 %v694, %v926
        %v928 = vpop.f32.mrb[0].mxu0
        %v929 = vadd.f32 %v698, %v928
        %930 = vmatprep.mubr.f32.mxu0 0.0
        %931 = vmatmul.mubr.f32.gmra.mrb[0].mxu0 %v777
        %v932 = vpop.f32.mrb[0].mxu0
        %v933 = vadd.f32 %v694, %v932
        %v934 = vpop.f32.mrb[0].mxu0
        %v935 = vadd.f32 %v698, %v934
        %936 = vmatprep.mubr.f32.mxu0 0.0
        %937 = vmatmul.mubr.f32.gmra.mrb[0].mxu0 %v780
        %v938 = vpop.f32.mrb[0].mxu0
        %v939 = vadd.f32 %v694, %v938
        %v940 = vpop.f32.mrb[0].mxu0
        %v941 = vadd.f32 %v698, %v940
        %942 = vdwg.mxu0
        %v943 = vmax.f32 %v849, %v851
        %944 = vmax.xlane.f32.xlu0 %v943
        %v945 = vpop.xlane.xlu0 %944
        %v946 = vmax.f32 %v855, %v857
        %947 = vmax.xlane.f32.xlu0 %v946
        %v948 = vpop.xlane.xlu0 %947
        %v949 = vmax.f32 %v861, %v863
        %950 = vmax.xlane.f32.xlu0 %v949
        %v951 = vpop.xlane.xlu0 %950
        %v952 = vmax.f32 %v867, %v869
        %953 = vmax.xlane.f32.xlu0 %v952
        %v954 = vpop.xlane.xlu0 %953
        %v955 = vmax.f32 %v873, %v875
        %956 = vmax.xlane.f32.xlu0 %v955
        %v957 = vpop.xlane.xlu0 %956
        %v958 = vmax.f32 %v879, %v881
        %959 = vmax.xlane.f32.xlu0 %v958
        %v960 = vpop.xlane.xlu0 %959
        %v961 = vmax.f32 %v885, %v887
        %962 = vmax.xlane.f32.xlu0 %v961
        %v963 = vpop.xlane.xlu0 %962
        %v964 = vmax.f32 %v891, %v893
        %965 = vmax.xlane.f32.xlu0 %v964
        %v966 = vpop.xlane.xlu0 %965
        %v967 = vmax.f32 %v897, %v899
        %968 = vmax.xlane.f32.xlu0 %v967
        %v969 = vpop.xlane.xlu0 %968
        %v970 = vmax.f32 %v903, %v905
        %971 = vmax.xlane.f32.xlu0 %v970
        %v972 = vpop.xlane.xlu0 %971
        %v973 = vmax.f32 %v909, %v911
        %974 = vmax.xlane.f32.xlu0 %v973
        %v975 = vpop.xlane.xlu0 %974
        %v976 = vmax.f32 %v915, %v917
        %977 = vmax.xlane.f32.xlu0 %v976
        %v978 = vpop.xlane.xlu0 %977
        %v979 = vmax.f32 %v921, %v923
        %980 = vmax.xlane.f32.xlu0 %v979
        %v981 = vpop.xlane.xlu0 %980
        %v982 = vmax.f32 %v927, %v929
        %983 = vmax.xlane.f32.xlu0 %v982
        %v984 = vpop.xlane.xlu0 %983
        %v985 = vmax.f32 %v933, %v935
        %986 = vmax.xlane.f32.xlu0 %v985
        %v987 = vpop.xlane.xlu0 %986
        %v988 = vmax.f32 %v939, %v941
        %989 = vmax.xlane.f32.xlu0 %v988
        %v990 = vpop.xlane.xlu0 %989
        %v991 = vsub.f32 %v849, %v945
        %v992 = vsub.f32 %v851, %v945
        %v993 = vsub.f32 %v855, %v948
        %v994 = vsub.f32 %v857, %v948
        %v995 = vsub.f32 %v861, %v951
        %v996 = vsub.f32 %v863, %v951
        %v997 = vsub.f32 %v867, %v954
        %v998 = vsub.f32 %v869, %v954
        %v999 = vsub.f32 %v873, %v957
        %v1000 = vsub.f32 %v875, %v957
        %v1001 = vsub.f32 %v879, %v960
        %v1002 = vsub.f32 %v881, %v960
        %v1003 = vsub.f32 %v885, %v963
        %v1004 = vsub.f32 %v887, %v963
        %v1005 = vsub.f32 %v891, %v966
        %v1006 = vsub.f32 %v893, %v966
        %v1007 = vsub.f32 %v897, %v969
        %v1008 = vsub.f32 %v899, %v969
        %v1009 = vsub.f32 %v903, %v972
        %v1010 = vsub.f32 %v905, %v972
        %v1011 = vsub.f32 %v909, %v975
        %v1012 = vsub.f32 %v911, %v975
        %v1013 = vsub.f32 %v915, %v978
        %v1014 = vsub.f32 %v917, %v978
        %v1015 = vsub.f32 %v921, %v981
        %v1016 = vsub.f32 %v923, %v981
        %v1017 = vsub.f32 %v927, %v984
        %v1018 = vsub.f32 %v929, %v984
        %v1019 = vsub.f32 %v933, %v987
        %v1020 = vsub.f32 %v935, %v987
        %v1021 = vsub.f32 %v939, %v990
        %v1022 = vsub.f32 %v941, %v990
        %v1023 = vmul.f32 %v991, 1.442695
        %v1024 = vpow.pop %v1023
        %v1025 = vmul.f32 %v992, 1.442695
        %v1026 = vpow.pop %v1025
        %v1027 = vmul.f32 %v993, 1.442695
        %v1028 = vpow.pop %v1027
        %v1029 = vmul.f32 %v994, 1.442695
        %v1030 = vpow.pop %v1029
        %v1031 = vmul.f32 %v995, 1.442695
        %v1032 = vpow.pop %v1031
        %v1033 = vmul.f32 %v996, 1.442695
        %v1034 = vpow.pop %v1033
        %v1035 = vmul.f32 %v997, 1.442695
        %v1036 = vpow.pop %v1035
        %v1037 = vmul.f32 %v998, 1.442695
        %v1038 = vpow.pop %v1037
        %v1039 = vmul.f32 %v999, 1.442695
        %v1040 = vpow.pop %v1039
        %v1041 = vmul.f32 %v1000, 1.442695
        %v1042 = vpow.pop %v1041
        %v1043 = vmul.f32 %v1001, 1.442695
        %v1044 = vpow.pop %v1043
        %v1045 = vmul.f32 %v1002, 1.442695
        %v1046 = vpow.pop %v1045
        %v1047 = vmul.f32 %v1003, 1.442695
        %v1048 = vpow.pop %v1047
        %v1049 = vmul.f32 %v1004, 1.442695
        %v1050 = vpow.pop %v1049
        %v1051 = vmul.f32 %v1005, 1.442695
        %v1052 = vpow.pop %v1051
        %v1053 = vmul.f32 %v1006, 1.442695
        %v1054 = vpow.pop %v1053
        %v1055 = vmul.f32 %v1007, 1.442695
        %v1056 = vpow.pop %v1055
        %v1057 = vmul.f32 %v1008, 1.442695
        %v1058 = vpow.pop %v1057
        %v1059 = vmul.f32 %v1009, 1.442695
        %v1060 = vpow.pop %v1059
        %v1061 = vmul.f32 %v1010, 1.442695
        %v1062 = vpow.pop %v1061
        %v1063 = vmul.f32 %v1011, 1.442695
        %v1064 = vpow.pop %v1063
        %v1065 = vmul.f32 %v1012, 1.442695
        %v1066 = vpow.pop %v1065
        %v1067 = vmul.f32 %v1013, 1.442695
        %v1068 = vpow.pop %v1067
        %v1069 = vmul.f32 %v1014, 1.442695
        %v1070 = vpow.pop %v1069
        %v1071 = vmul.f32 %v1015, 1.442695
        %v1072 = vpow.pop %v1071
        %v1073 = vmul.f32 %v1016, 1.442695
        %v1074 = vpow.pop %v1073
        %v1075 = vmul.f32 %v1017, 1.442695
        %v1076 = vpow.pop %v1075
        %v1077 = vmul.f32 %v1018, 1.442695
        %v1078 = vpow.pop %v1077
        %v1079 = vmul.f32 %v1019, 1.442695
        %v1080 = vpow.pop %v1079
        %v1081 = vmul.f32 %v1020, 1.442695
        %v1082 = vpow.pop %v1081
        %v1083 = vmul.f32 %v1021, 1.442695
        %v1084 = vpow.pop %v1083
        %v1085 = vmul.f32 %v1022, 1.442695
        %v1086 = vpow.pop %v1085
        %v1087 = vadd.f32 %v1024, %v1026
        %1088 = vadd.xlane.f32.xlu0 %v1087
        %v1089 = vpop.xlane.xlu0 %1088
        %v1090 = vadd.f32 %v1028, %v1030
        %1091 = vadd.xlane.f32.xlu0 %v1090
        %v1092 = vpop.xlane.xlu0 %1091
        %v1093 = vadd.f32 %v1032, %v1034
        %1094 = vadd.xlane.f32.xlu0 %v1093
        %v1095 = vpop.xlane.xlu0 %1094
        %v1096 = vadd.f32 %v1036, %v1038
        %1097 = vadd.xlane.f32.xlu0 %v1096
        %v1098 = vpop.xlane.xlu0 %1097
        %v1099 = vadd.f32 %v1040, %v1042
        %1100 = vadd.xlane.f32.xlu0 %v1099
        %v1101 = vpop.xlane.xlu0 %1100
        %v1102 = vadd.f32 %v1044, %v1046
        %1103 = vadd.xlane.f32.xlu0 %v1102
        %v1104 = vpop.xlane.xlu0 %1103
        %v1105 = vadd.f32 %v1048, %v1050
        %1106 = vadd.xlane.f32.xlu0 %v1105
        %v1107 = vpop.xlane.xlu0 %1106
        %v1108 = vadd.f32 %v1052, %v1054
        %1109 = vadd.xlane.f32.xlu0 %v1108
        %v1110 = vpop.xlane.xlu0 %1109
        %v1111 = vadd.f32 %v1056, %v1058
        %1112 = vadd.xlane.f32.xlu0 %v1111
        %v1113 = vpop.xlane.xlu0 %1112
        %v1114 = vadd.f32 %v1060, %v1062
        %1115 = vadd.xlane.f32.xlu0 %v1114
        %v1116 = vpop.xlane.xlu0 %1115
        %v1117 = vadd.f32 %v1064, %v1066
        %1118 = vadd.xlane.f32.xlu0 %v1117
        %v1119 = vpop.xlane.xlu0 %1118
        %v1120 = vadd.f32 %v1068, %v1070
        %1121 = vadd.xlane.f32.xlu0 %v1120
        %v1122 = vpop.xlane.xlu0 %1121
        %v1123 = vadd.f32 %v1072, %v1074
        %1124 = vadd.xlane.f32.xlu0 %v1123
        %v1125 = vpop.xlane.xlu0 %1124
        %v1126 = vadd.f32 %v1076, %v1078
        %1127 = vadd.xlane.f32.xlu0 %v1126
        %v1128 = vpop.xlane.xlu0 %1127
        %v1129 = vadd.f32 %v1080, %v1082
        %1130 = vadd.xlane.f32.xlu0 %v1129
        %v1131 = vpop.xlane.xlu0 %1130
        %v1132 = vadd.f32 %v1084, %v1086
        %1133 = vadd.xlane.f32.xlu0 %v1132
        %v1134 = vpop.xlane.xlu0 %1133
        %v1135 = vrcp.pop %v1089
        %v1136 = vrcp.pop %v1092
        %v1137 = vrcp.pop %v1095
        %v1138 = vrcp.pop %v1098
        %v1139 = vrcp.pop %v1101
        %v1140 = vrcp.pop %v1104
        %v1141 = vrcp.pop %v1107
        %v1142 = vrcp.pop %v1110
        %v1143 = vrcp.pop %v1113
        %v1144 = vrcp.pop %v1116
        %v1145 = vrcp.pop %v1119
        %v1146 = vrcp.pop %v1122
        %v1147 = vrcp.pop %v1125
        %v1148 = vrcp.pop %v1128
        %v1149 = vrcp.pop %v1131
        %v1150 = vrcp.pop %v1134
        %v1151 = vmul.f32 %v1024, %v1135
        %v1152 = vmul.f32 %v1026, %v1135
        %v1153 = vmul.f32 %v1028, %v1136
        %v1154 = vmul.f32 %v1030, %v1136
        %v1155 = vmul.f32 %v1032, %v1137
        %v1156 = vmul.f32 %v1034, %v1137
        %v1157 = vmul.f32 %v1036, %v1138
        %v1158 = vmul.f32 %v1038, %v1138
        %v1159 = vmul.f32 %v1040, %v1139
        %v1160 = vmul.f32 %v1042, %v1139
        %v1161 = vmul.f32 %v1044, %v1140
        %v1162 = vmul.f32 %v1046, %v1140
        %v1163 = vmul.f32 %v1048, %v1141
        %v1164 = vmul.f32 %v1050, %v1141
        %v1165 = vmul.f32 %v1052, %v1142
        %v1166 = vmul.f32 %v1054, %v1142
        %v1167 = vmul.f32 %v1056, %v1143
        %v1168 = vmul.f32 %v1058, %v1143
        %v1169 = vmul.f32 %v1060, %v1144
        %v1170 = vmul.f32 %v1062, %v1144
        %v1171 = vmul.f32 %v1064, %v1145
        %v1172 = vmul.f32 %v1066, %v1145
        %v1173 = vmul.f32 %v1068, %v1146
        %v1174 = vmul.f32 %v1070, %v1146
        %v1175 = vmul.f32 %v1072, %v1147
        %v1176 = vmul.f32 %v1074, %v1147
        %v1177 = vmul.f32 %v1076, %v1148
        %v1178 = vmul.f32 %v1078, %v1148
        %v1179 = vmul.f32 %v1080, %v1149
        %v1180 = vmul.f32 %v1082, %v1149
        %v1181 = vmul.f32 %v1084, %v1150
        %v1182 = vmul.f32 %v1086, %v1150
        %1183 = vst [vmem:[%s364] sm:$0xff] %v1151
        %1184 = vst [vmem:[%s364 + $0x8] sm:$0xff] %v1152
        %1185 = vst [vmem:[%s364 + $0x10] sm:$0xff] %v1153
        %1186 = vst [vmem:[%s364 + $0x18] sm:$0xff] %v1154
        %1187 = vst [vmem:[%s364 + $0x20] sm:$0xff] %v1155
        %1188 = vst [vmem:[%s364 + $0x28] sm:$0xff] %v1156
        %1189 = vst [vmem:[%s364 + $0x30] sm:$0xff] %v1157
        %1190 = vst [vmem:[%s364 + $0x38] sm:$0xff] %v1158
        %1191 = vst [vmem:[%s364 + $0x40] sm:$0xff] %v1159
        %1192 = vst [vmem:[%s364 + $0x48] sm:$0xff] %v1160
        %1193 = vst [vmem:[%s364 + $0x50] sm:$0xff] %v1161
        %1194 = vst [vmem:[%s364 + $0x58] sm:$0xff] %v1162
        %1195 = vst [vmem:[%s364 + $0x60] sm:$0xff] %v1163
        %1196 = vst [vmem:[%s364 + $0x68] sm:$0xff] %v1164
        %1197 = vst [vmem:[%s364 + $0x70] sm:$0xff] %v1165
        %1198 = vst [vmem:[%s364 + $0x78] sm:$0xff] %v1166
        %1199 = vst [vmem:[%s364 + $0x80] sm:$0xff] %v1167
        %1200 = vst [vmem:[%s364 + $0x88] sm:$0xff] %v1168
        %1201 = vst [vmem:[%s364 + $0x90] sm:$0xff] %v1169
        %1202 = vst [vmem:[%s364 + $0x98] sm:$0xff] %v1170
        %1203 = vst [vmem:[%s364 + $0xa0] sm:$0xff] %v1171
        %1204 = vst [vmem:[%s364 + $0xa8] sm:$0xff] %v1172
        %1205 = vst [vmem:[%s364 + $0xb0] sm:$0xff] %v1173
        %1206 = vst [vmem:[%s364 + $0xb8] sm:$0xff] %v1174
        %1207 = vst [vmem:[%s364 + $0xc0] sm:$0xff] %v1175
        %1208 = vst [vmem:[%s364 + $0xc8] sm:$0xff] %v1176
        %1209 = vst [vmem:[%s364 + $0xd0] sm:$0xff] %v1177
        %1210 = vst [vmem:[%s364 + $0xd8] sm:$0xff] %v1178
        %1211 = vst [vmem:[%s364 + $0xe0] sm:$0xff] %v1179
        %1212 = vst [vmem:[%s364 + $0xe8] sm:$0xff] %v1180
        %1213 = vst [vmem:[%s364 + $0xf0] sm:$0xff] %v1181
        %1214 = vst [vmem:[%s364 + $0xf8] sm:$0xff] %v1182
        %v1215 = vld [vmem:[#allocation4] sm:$0xff]
        %v1216 = vld [vmem:[#allocation4 + $0x8] sm:$0xff]
        %v1217 = vpack.c.bf16 %v1153, %v1151
        %v1218 = vpack.c.bf16 %v1154, %v1152
        %v1219 = vpack.c.bf16 %v1157, %v1155
        %v1220 = vpack.c.bf16 %v1158, %v1156
        %v1221 = vpack.c.bf16 %v1161, %v1159
        %v1222 = vpack.c.bf16 %v1162, %v1160
        %v1223 = vpack.c.bf16 %v1165, %v1163
        %v1224 = vpack.c.bf16 %v1166, %v1164
        %v1225 = vpack.c.bf16 %v1169, %v1167
        %v1226 = vpack.c.bf16 %v1170, %v1168
        %v1227 = vpack.c.bf16 %v1173, %v1171
        %v1228 = vpack.c.bf16 %v1174, %v1172
        %v1229 = vpack.c.bf16 %v1177, %v1175
        %v1230 = vpack.c.bf16 %v1178, %v1176
        %v1231 = vpack.c.bf16 %v1181, %v1179
        %v1232 = vpack.c.bf16 %v1182, %v1180
        %1233 = vmatprep.subr.bf16.mxu0 %v1218
        %1234 = vmatpush1.bf16.xpose.msra.mxu0 %v1217
        %1235 = vmatprep.subr.bf16.mxu0 %v1220
        %1236 = vmatpush1.bf16.xpose.msra.mxu0 %v1219
        %1237 = vmatprep.subr.bf16.mxu0 %v1222
        %1238 = vmatpush1.bf16.xpose.msra.mxu0 %v1221
        %1239 = vmatprep.subr.bf16.mxu0 %v1224
        %1240 = vmatpush1.bf16.xpose.msra.mxu0 %v1223
        %1241 = vmatprep.subr.bf16.mxu0 %v1226
        %1242 = vmatpush1.bf16.xpose.msra.mxu0 %v1225
        %1243 = vmatprep.subr.bf16.mxu0 %v1228
        %1244 = vmatpush1.bf16.xpose.msra.mxu0 %v1227
        %1245 = vmatprep.subr.bf16.mxu0 %v1230
        %1246 = vmatpush1.bf16.xpose.msra.mxu0 %v1229
        %1247 = vmatprep.subr.bf16.mxu0 %v1232
        %1248 = vmatpush1.bf16.xpose.msra.mxu0 %v1231
        %1249 = vmatprep.subr.bf16.mxu0 0
        %1250 = vmatpush1.bf16.xpose.msra.mxu0 0
        %1251 = vmatprep.subr.bf16.mxu0 0
        %1252 = vmatpush1.bf16.xpose.msra.mxu0 0
        %1253 = vmatprep.subr.bf16.mxu0 0
        %1254 = vmatpush1.bf16.xpose.msra.mxu0 0
        %1255 = vmatprep.subr.bf16.mxu0 0
        %1256 = vmatpush1.bf16.xpose.msra.mxu0 0
        %1257 = vmatprep.subr.bf16.mxu0 0
        %1258 = vmatpush1.bf16.xpose.msra.mxu0 0
        %1259 = vmatprep.subr.bf16.mxu0 0
        %1260 = vmatpush1.bf16.xpose.msra.mxu0 0
        %1261 = vmatprep.subr.bf16.mxu0 0
        %1262 = vmatpush1.bf16.xpose.msra.mxu0 0
        %1263 = vmatprep.subr.bf16.mxu0 0
        %1264 = vmatpush1.bf16.xpose.msra.mxu0 0
        %1265 = vmatprep.mubr.bf16.mxu0 %v1216
        %1266 = vmatmul.mubr.bf16.gmra.mrb[0].mxu0 %v1215
        %v1267 = vpop.f32.mrb[0].mxu0
        %v1268 = vadd.f32 0.0, %v1267
        %v1269 = vpop.f32.mrb[0].mxu0
        %v1270 = vpop.f32.mrb[0].mxu0
        %v1271 = vadd.f32 0.0, %v1270
        %v1272 = vpop.f32.mrb[0].mxu0
        %1273 = vdwg.mxu0
        %s1274 = sld [smem:[#allocation5]]
        %v1275 = vstv %s1274
        %v1276 = vmul.f32 %v1275, %v1268
        %v1277 = vmul.f32 %v1275, %v1271
        %v1278 = vadd.f32 %v1276, %v683
        %v1279 = vadd.f32 %v1277, %v684
        %1280 = vst [vmem:[%s357] sm:$0xff] %v1278
        %1281 = vst [vmem:[%s357 + $0x8] sm:$0xff] %v1279
        %s1282 = sand.u32 %s204, 1
        %s1283 = scalar_lea.sflag [#allocation7], %s1282
        %s1284 = sand.u32 %s204, 1
        %s1285 = smul.addr %s1284, 16
        %s1286 = scalar_lea.vmem [#allocation10], %s1285
        %s1287 = sand.u32 %s232, 1
        %s1288 = scalar_lea.sflag [#allocation12], %s1287
        %s1289 = sand.u32 %s232, 1
        %s1290 = smul.addr %s1289, 256
        %s1291 = scalar_lea.vmem [#allocation11], %s1290
        // Predicated region
        $region61: #{tpu_custom_call.1} parent=47 // pred_check
          %p1292 = pneg %p214
        $region62: #{tpu_custom_call.1} parent=47 // pred_check_branch
          %1294 = sbr.rel (%p1292) target = $region64
        $region63: #{tpu_custom_call.1} parent=47 // pred_region
          %s1296 = ssub.s32 256, 256
          %1297 = vsyncadd %s1283, %s1296
          %s1298 = smul.addr %s34, 4
          %s1299 = sadd.s32 %s35, %s1298
          %s1300 = smul.addr %s1299, 128
          %s1301 = scalar_lea.hbm %s7, %s1300
          %s1302 = sshll.u32 %s1286, 4
          %s1303 = int_to_ptr.vmem [resolvable:$true] %s1302
          %1308 = dma.vmem_to_hbm [thread:$0]  %s1303, 256, %s1301, %s1283, 128, 256, 8
        $region64: #{tpu_custom_call.1} parent=47 // pred_fallthru
          _
        // Predicated region
        $region65: #{tpu_custom_call.1} parent=47 // pred_check
          %p1309 = pneg %p242
        $region66: #{tpu_custom_call.1} parent=47 // pred_check_branch
          %1311 = sbr.rel (%p1309) target = $region68
        $region67: #{tpu_custom_call.1} parent=47 // pred_region
          %s1312 = smul.u32 16, %s35
          %s1314 = ssub.s32 4096, 4096
          %1315 = vsyncadd %s1288, %s1314
          %s1316 = smul.addr %s1312, 2
          %s1317 = smul.addr %s34, 64
          %s1318 = sadd.s32 %s1316, %s1317
          %s1319 = smul.addr %s1318, 128
          %s1320 = scalar_lea.hbm %s8, %s1319
          %s1321 = sshll.u32 %s1291, 4
          %s1322 = int_to_ptr.vmem [resolvable:$true] %s1321
          %1327 = dma.vmem_to_hbm [thread:$0]  %s1322, 4096, %s1320, %s1288, 256, 256, 16
        $region68: #{tpu_custom_call.1} parent=47 // pred_fallthru
          _
      $region48: #{tpu_custom_call.1} parent=5 // pred_fallthru
        _
      %p1328 = scmp.le.s32.totalorder 2, %s25
      // Predicated region
      $region69: #{tpu_custom_call.1} parent=5 // pred_check
        %p1329 = pneg %p1328
      $region70: #{tpu_custom_call.1} parent=5 // pred_check_branch
        %1331 = sbr.rel (%p1329) target = $region72
      $region71: #{tpu_custom_call.1} parent=5 // pred_region
        %s1332 = ssub.s32 %s25, 2
        // Predicated region
        $region73: #{tpu_custom_call.1} parent=71 // pred_check
          %p1333 = pneg %p220
        $region74: #{tpu_custom_call.1} parent=71 // pred_check_branch
          %1335 = sbr.rel (%p1333) target = $region76
        $region75: #{tpu_custom_call.1} parent=71 // pred_region
          %s1336 = sand.u32 %s205, 1
          %s1337 = scalar_lea.sflag [#allocation7], %s1336
          %s1338 = sand.u32 %s205, 1
          %s1339 = smul.addr %s1338, 16
          %s1340 = scalar_lea.vmem [#allocation10], %s1339
          %1341 = dma.done %s1337, 256
        $region76: #{tpu_custom_call.1} parent=71 // pred_fallthru
          _
        // Predicated region
        $region77: #{tpu_custom_call.1} parent=71 // pred_check
          %p1342 = pneg %p248
        $region78: #{tpu_custom_call.1} parent=71 // pred_check_branch
          %1344 = sbr.rel (%p1342) target = $region80
        $region79: #{tpu_custom_call.1} parent=71 // pred_region
          %s1345 = sand.u32 %s233, 1
          %s1346 = scalar_lea.sflag [#allocation12], %s1345
          %s1347 = sand.u32 %s233, 1
          %s1348 = smul.addr %s1347, 256
          %s1349 = scalar_lea.vmem [#allocation11], %s1348
          %1350 = dma.done %s1346, 4096
        $region80: #{tpu_custom_call.1} parent=71 // pred_fallthru
          _
      $region72: #{tpu_custom_call.1} parent=5 // pred_fallthru
        _
    $region6: #{tpu_custom_call.1} parent=1 // loop_footer
      %s29 = sadd.s32 1, %s25
    $region7: #{tpu_custom_call.1} parent=1 // loop_footer_branch
      %24 = sbr.rel target = $region3
    $region8: #{tpu_custom_call.1} parent=1 // loop_exit
      _
    %1351 = vsyncpa [#allocation6], 1
    %s1352 = scalar_lea.sflag [#allocation6], 1
    %1353 = vsyncpa %s1352, 1
    %1354 = vsyncpa [#allocation7], 1
    %s1355 = scalar_lea.sflag [#allocation7], 1
    %1356 = vsyncpa %s1355, 1
    %1357 = vsyncpa [#allocation12], 1
    %s1358 = scalar_lea.sflag [#allocation12], 1
    %1359 = vsyncpa %s1358, 1
    %1360 = vsyncpa [#allocation8], 1
    %s1361 = scalar_lea.sflag [#allocation8], 1
    %1362 = vsyncpa %s1361, 1

</llo_original>
